<compile_context>
chip_gen: v7x
topology: tpu7x:2x2x1
jax: 0.10.0
libtpu: 0.0.40
codegen_flags: <defaults>
</compile_context>

<pallas_src>
import numpy as np
import jax
import jax.numpy as jnp
from jax.experimental import pallas as pl
from jax.experimental.pallas import tpu as pltpu


def _gaussian_1d(kernel_size: int, sigma: float) -> np.ndarray:
    """Same construction as the PyTorch module (separable factor)."""
    mean = (kernel_size - 1) / 2.0
    x = np.arange(kernel_size, dtype=np.float32)
    e = np.exp(-(((x - mean) / sigma) ** 2) / 2.0)
    return (e / e.sum()).astype(np.float32)


def _folded_downsample_matrix(length: int, k1d: np.ndarray, pad: int,
                              stride: int = 2) -> np.ndarray:
    """A with A[o, clamp(stride*o + d - pad, 0, length-1)] += k1d[d].

    Equivalent to replicate-padding by `pad` followed by a VALID 1-D conv with
    the given stride, but with the padding folded into the edge columns so the
    kernel never materialises a padded copy of the image.
    """
    K = k1d.shape[0]
    out_len = (length + 2 * pad - K) // stride + 1
    A = np.zeros((out_len, length), dtype=np.float32)
    for o in range(out_len):
        for d in range(K):
            src = min(max(stride * o + d - pad, 0), length - 1)
            A[o, src] += k1d[d]
    return A


def _choose_block_planes(n_planes: int, width: int) -> int:
    """How many planes to fold into the lane dim of one grid step.

    Lane-density benefit saturates at 128 lanes while the kron(I_NP, Bt) cost
    grows with NP (MXU MACs on zero blocks) and NP^2 (BtB DMA/VMEM footprint),
    so pick the SMALLEST divisor of n_planes whose folded width reaches 128
    lanes (NP=1 when W itself is >= 128), while keeping G = n_planes/NP >= 2
    so the grid pipelines and can split across v7x's two TensorCores.
    """
    if width >= 128 or n_planes == 1:
        return 1
    divisors = [d for d in range(1, n_planes + 1) if n_planes % d == 0]
    # Keep at least two grid steps whenever possible (pipelining / 2-TC split).
    cands = [d for d in divisors if n_planes // d >= 2] or [n_planes]
    aligned = [d for d in cands if d * width >= 128 and (d * width) % 128 == 0]
    if aligned:
        return aligned[0]            # smallest 128-aligned fold
    wide = [d for d in cands if d * width >= 128]
    if wide:
        return wide[0]               # smallest fold reaching 128 lanes
    # Tiny W: accept a < 128-lane (masked-store) block rather than a size-1
    # grid; idling a TensorCore costs more than the masked store path.
    return cands[-1]


def _vmem_limit_bytes(H: int, W: int, NP: int, dims, itemsize: int) -> int:
    """Explicit scoped-VMEM budget from the per-block footprint."""
    need = 2 * H * NP * W * itemsize                          # 2x input block
    for (h, w, oh, ow) in dims:
        need += (oh * h + (NP * w) * (NP * ow)) * itemsize    # resident consts
        need += 2 * oh * NP * ow * itemsize                   # 2x output block
        need += oh * NP * w * itemsize                        # level temp
    # 4x headroom for compiler scratch; clamp so the limit is safe on
    # v5e (16/128 MiB default/physical), v6e (32/128) and v7x (32/64).
    return int(min(32 * 1024 * 1024, max(8 * 1024 * 1024, 4 * need)))


def _make_pyramid_kernel(n_levels: int, mxu_dtype):
    def kernel(x_ref, *refs):
        ab_refs = refs[:2 * n_levels]            # A_0, BtB_0, A_1, BtB_1, ...
        out_refs = refs[2 * n_levels:]           # o_0, ..., o_{L-1}
        cur = x_ref[...].astype(mxu_dtype)       # (H0, NP*W0) plane-folded slab
        for k in range(n_levels):
            a = ab_refs[2 * k][...]              # (OH, H)
            btb = ab_refs[2 * k + 1][...]        # (NP*W, NP*OW) block-diagonal
            # TODO(synk): v5e — the banded (<=K nonzeros/row) A contraction
            # could be a K-tap VPU stencil over sublane-strided ref reads.
            t = jnp.dot(a, cur, preferred_element_type=jnp.float32)     # (OH, NP*W)
            y = jnp.dot(t.astype(mxu_dtype), btb,
                        preferred_element_type=jnp.float32)             # (OH, NP*OW)
            out_refs[k][...] = y.astype(out_refs[k].dtype)
            if k + 1 < n_levels:
                # Feed the next level from VMEM (the just-written output block)
                # rather than a live vreg value: bounds vreg pressure and
                # matches iterating the conv on its own stored outputs.
                cur = out_refs[k][...].astype(mxu_dtype)
    return kernel


def _build_pyramid_call(kernel, G, dims, H, W, NP, out_dtype, vmem_limit,
                        buffered_consts):
    const_kwargs = {"pipeline_mode": pl.Buffered(1)} if buffered_consts else {}
    in_specs = [pl.BlockSpec((None, H, NP * W), lambda j: (j, 0, 0))]
    out_specs = []
    out_shapes = []
    for (h, w, oh, ow) in dims:
        in_specs.append(pl.BlockSpec((oh, h), lambda j: (0, 0), **const_kwargs))
        in_specs.append(pl.BlockSpec((NP * w, NP * ow), lambda j: (0, 0),
                                     **const_kwargs))
        # Deep levels may be < 128 lanes wide (masked stores) — tiny data, OK.
        out_specs.append(pl.BlockSpec((None, oh, NP * ow), lambda j: (j, 0, 0)))
        out_shapes.append(jax.ShapeDtypeStruct((G, oh, NP * ow), out_dtype))
    return pl.pallas_call(
        kernel,
        out_shape=tuple(out_shapes),
        grid=(G,),
        in_specs=in_specs,
        out_specs=tuple(out_specs),
        compiler_params=pltpu.CompilerParams(
            dimension_semantics=("parallel",),
            vmem_limit_bytes=vmem_limit),
    )


def gaussian_pyramid(x, k1d, pad, scales, *, low_precision=False):
    """Returns [x, G(x), G(G(x)), ...] with `scales` entries, NCHW layout."""
    if scales <= 1:
        return [x]
    B, C, H, W = x.shape
    N = B * C
    K = int(k1d.shape[0])
    n_levels = scales - 1

    # Per-level geometry (PyTorch Conv2d output-size rule, stride=2).
    dims = []
    h, w = H, W
    for _ in range(n_levels):
        oh = (h + 2 * pad - K) // 2 + 1
        ow = (w + 2 * pad - K) // 2 + 1
        dims.append((h, w, oh, ow))
        h, w = oh, ow

    NP = _choose_block_planes(N, W)      # planes folded per grid step
    G = N // NP                          # plane-block grid (parallel)
    storage_dtype = jnp.bfloat16 if low_precision else jnp.float32

    # Constant per-level matrices with the replicate padding folded in.
    eye = np.eye(NP, dtype=np.float32)
    mats = []
    for (h, w, oh, ow) in dims:
        A = _folded_downsample_matrix(h, k1d, pad)        # (oh, h)
        Bt = _folded_downsample_matrix(w, k1d, pad).T     # (w, ow)
        BtB = np.kron(eye, Bt) if NP > 1 else Bt          # (NP*w, NP*ow)
        mats += [jnp.asarray(A, dtype=storage_dtype),
                 jnp.asarray(BtB, dtype=storage_dtype)]

    # Layout plumbing.  Plane-block-major (G, H, NP*W): blocks always equal
    # the full last-two array dims.  NP == 1 needs only a FREE reshape (no
    # transpose / extra HBM round trip); NP > 1 folds planes into lanes.
    x_planes = jnp.reshape(x, (N, H, W))
    if low_precision:
        x_planes = x_planes.astype(storage_dtype)
    if NP == 1:
        x_in = x_planes
    else:
        x_in = jnp.reshape(
            jnp.transpose(jnp.reshape(x_planes, (G, NP, H, W)), (0, 2, 1, 3)),
            (G, H, NP * W))

    vmem_limit = _vmem_limit_bytes(H, W, NP, dims,
                                   jnp.dtype(storage_dtype).itemsize)
    kernel = _make_pyramid_kernel(n_levels, storage_dtype)

    try:
        outs = _build_pyramid_call(kernel, G, dims, H, W, NP, x.dtype,
                                   vmem_limit, buffered_consts=True)(x_in, *mats)
    except Exception:
        # Fallback for JAX builds without BlockSpec pipeline_mode support.
        outs = _build_pyramid_call(kernel, G, dims, H, W, NP, x.dtype,
                                   vmem_limit, buffered_consts=False)(x_in, *mats)

    # Back to NCHW for each pyramid level.
    pyramid = [x]
    for (h, w, oh, ow), o in zip(dims, outs):
        if NP == 1:
            y = jnp.reshape(o, (B, C, oh, ow))
        else:
            y = jnp.reshape(
                jnp.transpose(jnp.reshape(o, (G, oh, NP, ow)), (0, 2, 1, 3)),
                (B, C, oh, ow))
        pyramid.append(y)
    return pyramid


class GaussianSmoothing:
    """JAX/Pallas port of the PyTorch GaussianSmoothing module (forward only)."""

    def __init__(self, channels, kernel_size, sigma):
        self.channels = channels
        self.kernel_size = kernel_size
        self.pad = int((kernel_size - 1) / 2)
        self.k1d = _gaussian_1d(kernel_size, sigma)
        # Full 2-D kernel (identical to the PyTorch conv weight per channel);
        # used only by the reference check in __main__.
        self.kernel2d = np.outer(self.k1d, self.k1d).astype(np.float32)

    def __call__(self, x, scales, low_precision=False):
        return gaussian_pyramid(x, self.k1d, self.pad, scales,
                                low_precision=low_precision)


def _reference_conv(x, kernel2d, pad, channels):
    """Pure-JAX depthwise conv reference matching PyTorch Conv2d semantics."""
    xp = jnp.pad(x, ((0, 0), (0, 0), (pad, pad), (pad, pad)), mode="edge")
    w = jnp.tile(jnp.asarray(kernel2d, jnp.float32)[None, None], (channels, 1, 1, 1))
    return jax.lax.conv_general_dilated(
        xp, w, window_strides=(2, 2), padding="VALID",
        feature_group_count=channels,
        dimension_numbers=("NCHW", "OIHW", "NCHW"),
        precision=jax.lax.Precision.HIGHEST)


if __name__ == "__main__":
    key0, key1 = jax.random.split(jax.random.PRNGKey(0))

    # --- Main check: small square image, lane-folded path (NP=4, G=2). ---
    B, C, H, W = 2, 4, 16, 16
    x = jax.random.normal(key0, (B, C, H, W), dtype=jnp.float32)

    smoother = GaussianSmoothing(channels=C, kernel_size=3, sigma=1.0)
    scales = 3
    pyramid = smoother(x, scales)
    pyramid = jax.block_until_ready(pyramid)

    # Shape checks: [x, conv(x), conv(conv(x))] with stride-2 downsampling.
    assert len(pyramid) == scales
    assert pyramid[0].shape == (B, C, 16, 16)
    assert pyramid[1].shape == (B, C, 8, 8)
    assert pyramid[2].shape == (B, C, 4, 4)

    ref = x
    for k in range(scales - 1):
        ref = _reference_conv(ref, smoother.kernel2d, smoother.pad, C)
        np.testing.assert_allclose(np.asarray(pyramid[k + 1]), np.asarray(ref),
                                   rtol=1e-4, atol=1e-5)

    # --- Secondary check: wide image -> NP=1 plane-major path (no transpose). ---
    B2, C2, H2, W2 = 1, 2, 16, 128
    x2 = jax.random.normal(key1, (B2, C2, H2, W2), dtype=jnp.float32)
    smoother2 = GaussianSmoothing(channels=C2, kernel_size=3, sigma=1.0)
    pyr2 = jax.block_until_ready(smoother2(x2, 2))
    ref2 = _reference_conv(x2, smoother2.kernel2d, smoother2.pad, C2)
    assert pyr2[1].shape == ref2.shape == (B2, C2, 8, 64)
    np.testing.assert_allclose(np.asarray(pyr2[1]), np.asarray(ref2),
                               rtol=1e-4, atol=1e-5)

    print("KERNEL_OK")
</pallas_src>

<mosaic_0001>
module attributes {stable_mosaic.version = 11 : i64} {
  func.func @kernel(%arg0: i32, %arg1: memref<1x16x64xf32, #tpu.memory_space<vmem>>, %arg2: memref<8x16xf32, #tpu.memory_space<vmem>>, %arg3: memref<64x32xf32, #tpu.memory_space<vmem>>, %arg4: memref<4x8xf32, #tpu.memory_space<vmem>>, %arg5: memref<32x16xf32, #tpu.memory_space<vmem>>, %arg6: memref<1x8x32xf32, #tpu.memory_space<vmem>>, %arg7: memref<1x4x16xf32, #tpu.memory_space<vmem>>) attributes {dimension_semantics = [#tpu.dimension_semantics<parallel>], iteration_bounds = array<i64: 2>, scalar_prefetch = 0 : i64, scratch_operands = 0 : i64, tpu.core_type = #tpu.core_type<tc>, window_params = [{transform_indices = @transform_0, window_bounds = array<i64: 1, 16, 64>}, {pipeline_mode = #tpu.pipeline_mode<synchronous>, transform_indices = @transform_1, window_bounds = array<i64: 8, 16>}, {pipeline_mode = #tpu.pipeline_mode<synchronous>, transform_indices = @transform_2, window_bounds = array<i64: 64, 32>}, {pipeline_mode = #tpu.pipeline_mode<synchronous>, transform_indices = @transform_3, window_bounds = array<i64: 4, 8>}, {pipeline_mode = #tpu.pipeline_mode<synchronous>, transform_indices = @transform_4, window_bounds = array<i64: 32, 16>}, {transform_indices = @transform_5, window_bounds = array<i64: 1, 8, 32>}, {transform_indices = @transform_6, window_bounds = array<i64: 1, 4, 16>}]} {
    %c0 = arith.constant 0 : index
    %c0_0 = arith.constant 0 : index
    %c0_1 = arith.constant 0 : index
    %0 = vector.load %arg1[%c0, %c0_0, %c0_1] : memref<1x16x64xf32, #tpu.memory_space<vmem>>, vector<1x16x64xf32>
    %1 = vector.shape_cast %0 : vector<1x16x64xf32> to vector<16x64xf32>
    %c0_2 = arith.constant 0 : index
    %c0_3 = arith.constant 0 : index
    %2 = vector.load %arg2[%c0_2, %c0_3] : memref<8x16xf32, #tpu.memory_space<vmem>>, vector<8x16xf32>
    %c0_4 = arith.constant 0 : index
    %c0_5 = arith.constant 0 : index
    %3 = vector.load %arg3[%c0_4, %c0_5] : memref<64x32xf32, #tpu.memory_space<vmem>>, vector<64x32xf32>
    %cst = arith.constant dense<0.000000e+00> : vector<8x64xf32>
    %4 = tpu.matmul %2, %1, %cst {dimension_numbers = #tpu.dot_dimension_numbers<[1], [0], [0], [1], [0, 0, 1, 1], [], []>} : vector<8x16xf32>, vector<16x64xf32>, vector<8x64xf32> -> vector<8x64xf32>
    %cst_6 = arith.constant dense<0.000000e+00> : vector<8x32xf32>
    %5 = tpu.matmul %4, %3, %cst_6 {dimension_numbers = #tpu.dot_dimension_numbers<[1], [0], [0], [1], [0, 0, 1, 1], [], []>} : vector<8x64xf32>, vector<64x32xf32>, vector<8x32xf32> -> vector<8x32xf32>
    %c0_7 = arith.constant 0 : index
    %c0_8 = arith.constant 0 : index
    %c0_9 = arith.constant 0 : index
    %6 = vector.load %arg6[%c0_7, %c0_8, %c0_9] : memref<1x8x32xf32, #tpu.memory_space<vmem>>, vector<1x8x32xf32>
    %7 = vector.shape_cast %6 : vector<1x8x32xf32> to vector<8x32xf32>
    %8 = vector.shape_cast %5 : vector<8x32xf32> to vector<1x8x32xf32>
    tpu.vector_store %arg6[%c0_7, %c0_8, %c0_9], %8 {strides = array<i32>} : memref<1x8x32xf32, #tpu.memory_space<vmem>>, vector<1x8x32xf32>,
    %c0_10 = arith.constant 0 : index
    %c0_11 = arith.constant 0 : index
    %c0_12 = arith.constant 0 : index
    %9 = vector.load %arg6[%c0_10, %c0_11, %c0_12] : memref<1x8x32xf32, #tpu.memory_space<vmem>>, vector<1x8x32xf32>
    %10 = vector.shape_cast %9 : vector<1x8x32xf32> to vector<8x32xf32>
    %c0_13 = arith.constant 0 : index
    %c0_14 = arith.constant 0 : index
    %11 = vector.load %arg4[%c0_13, %c0_14] : memref<4x8xf32, #tpu.memory_space<vmem>>, vector<4x8xf32>
    %c0_15 = arith.constant 0 : index
    %c0_16 = arith.constant 0 : index
    %12 = vector.load %arg5[%c0_15, %c0_16] : memref<32x16xf32, #tpu.memory_space<vmem>>, vector<32x16xf32>
    %cst_17 = arith.constant dense<0.000000e+00> : vector<4x32xf32>
    %13 = tpu.matmul %11, %10, %cst_17 {dimension_numbers = #tpu.dot_dimension_numbers<[1], [0], [0], [1], [0, 0, 1, 1], [], []>} : vector<4x8xf32>, vector<8x32xf32>, vector<4x32xf32> -> vector<4x32xf32>
    %cst_18 = arith.constant dense<0.000000e+00> : vector<4x16xf32>
    %14 = tpu.matmul %13, %12, %cst_18 {dimension_numbers = #tpu.dot_dimension_numbers<[1], [0], [0], [1], [0, 0, 1, 1], [], []>} : vector<4x32xf32>, vector<32x16xf32>, vector<4x16xf32> -> vector<4x16xf32>
    %c0_19 = arith.constant 0 : index
    %c0_20 = arith.constant 0 : index
    %c0_21 = arith.constant 0 : index
    %15 = vector.load %arg7[%c0_19, %c0_20, %c0_21] : memref<1x4x16xf32, #tpu.memory_space<vmem>>, vector<1x4x16xf32>
    %16 = vector.shape_cast %15 : vector<1x4x16xf32> to vector<4x16xf32>
    %17 = vector.shape_cast %14 : vector<4x16xf32> to vector<1x4x16xf32>
    tpu.vector_store %arg7[%c0_19, %c0_20, %c0_21], %17 {strides = array<i32>} : memref<1x4x16xf32, #tpu.memory_space<vmem>>, vector<1x4x16xf32>,
    return
  }
  func.func @transform_0(%arg0: i32) -> (i32, i32, i32) {
    %c0_i32 = arith.constant 0 : i32
    %c0_i32_0 = arith.constant 0 : i32
    %c0_i32_1 = arith.constant 0 : i32
    return %arg0, %c0_i32, %c0_i32_0 : i32, i32, i32
  }
  func.func @transform_1(%arg0: i32) -> (i32, i32) {
    %c0_i32 = arith.constant 0 : i32
    %c0_i32_0 = arith.constant 0 : i32
    %c0_i32_1 = arith.constant 0 : i32
    return %c0_i32, %c0_i32_0 : i32, i32
  }
  func.func @transform_2(%arg0: i32) -> (i32, i32) {
    %c0_i32 = arith.constant 0 : i32
    %c0_i32_0 = arith.constant 0 : i32
    %c0_i32_1 = arith.constant 0 : i32
    return %c0_i32, %c0_i32_0 : i32, i32
  }
  func.func @transform_3(%arg0: i32) -> (i32, i32) {
    %c0_i32 = arith.constant 0 : i32
    %c0_i32_0 = arith.constant 0 : i32
    %c0_i32_1 = arith.constant 0 : i32
    return %c0_i32, %c0_i32_0 : i32, i32
  }
  func.func @transform_4(%arg0: i32) -> (i32, i32) {
    %c0_i32 = arith.constant 0 : i32
    %c0_i32_0 = arith.constant 0 : i32
    %c0_i32_1 = arith.constant 0 : i32
    return %c0_i32, %c0_i32_0 : i32, i32
  }
  func.func @transform_5(%arg0: i32) -> (i32, i32, i32) {
    %c0_i32 = arith.constant 0 : i32
    %c0_i32_0 = arith.constant 0 : i32
    %c0_i32_1 = arith.constant 0 : i32
    return %arg0, %c0_i32, %c0_i32_0 : i32, i32, i32
  }
  func.func @transform_6(%arg0: i32) -> (i32, i32, i32) {
    %c0_i32 = arith.constant 0 : i32
    %c0_i32_0 = arith.constant 0 : i32
    %c0_i32_1 = arith.constant 0 : i32
    return %arg0, %c0_i32, %c0_i32_0 : i32, i32, i32
  }
}

module attributes {stable_mosaic.version = 11 : i64} {
  func.func @kernel(%arg0: i32, %arg1: memref<1x16x64xf32, #tpu.memory_space<vmem>>, %arg2: memref<8x16xf32, #tpu.memory_space<vmem>>, %arg3: memref<64x32xf32, #tpu.memory_space<vmem>>, %arg4: memref<4x8xf32, #tpu.memory_space<vmem>>, %arg5: memref<32x16xf32, #tpu.memory_space<vmem>>, %arg6: memref<1x8x32xf32, #tpu.memory_space<vmem>>, %arg7: memref<1x4x16xf32, #tpu.memory_space<vmem>>) attributes {dimension_semantics = [#tpu.dimension_semantics<parallel>], iteration_bounds = array<i64: 2>, scalar_prefetch = 0 : i64, scratch_operands = 0 : i64, tpu.core_type = #tpu.core_type<tc>, window_params = [{transform_indices = @transform_0, window_bounds = array<i64: 1, 16, 64>}, {pipeline_mode = #tpu.pipeline_mode<synchronous>, transform_indices = @transform_1, window_bounds = array<i64: 8, 16>}, {pipeline_mode = #tpu.pipeline_mode<synchronous>, transform_indices = @transform_2, window_bounds = array<i64: 64, 32>}, {pipeline_mode = #tpu.pipeline_mode<synchronous>, transform_indices = @transform_3, window_bounds = array<i64: 4, 8>}, {pipeline_mode = #tpu.pipeline_mode<synchronous>, transform_indices = @transform_4, window_bounds = array<i64: 32, 16>}, {transform_indices = @transform_5, window_bounds = array<i64: 1, 8, 32>}, {transform_indices = @transform_6, window_bounds = array<i64: 1, 4, 16>}]} {
    %c0 = arith.constant 0 : index
    %c0_0 = arith.constant 0 : index
    %c0_1 = arith.constant 0 : index
    %0 = vector.load %arg1[%c0, %c0_0, %c0_1] : memref<1x16x64xf32, #tpu.memory_space<vmem>>, vector<1x16x64xf32>
    %1 = vector.shape_cast %0 : vector<1x16x64xf32> to vector<16x64xf32>
    %c0_2 = arith.constant 0 : index
    %c0_3 = arith.constant 0 : index
    %2 = vector.load %arg2[%c0_2, %c0_3] : memref<8x16xf32, #tpu.memory_space<vmem>>, vector<8x16xf32>
    %c0_4 = arith.constant 0 : index
    %c0_5 = arith.constant 0 : index
    %3 = vector.load %arg3[%c0_4, %c0_5] : memref<64x32xf32, #tpu.memory_space<vmem>>, vector<64x32xf32>
    %cst = arith.constant dense<0.000000e+00> : vector<8x64xf32>
    %4 = tpu.matmul %2, %1, %cst {dimension_numbers = #tpu.dot_dimension_numbers<[1], [0], [0], [1], [0, 0, 1, 1], [], []>} : vector<8x16xf32>, vector<16x64xf32>, vector<8x64xf32> -> vector<8x64xf32>
    %cst_6 = arith.constant dense<0.000000e+00> : vector<8x32xf32>
    %5 = tpu.matmul %4, %3, %cst_6 {dimension_numbers = #tpu.dot_dimension_numbers<[1], [0], [0], [1], [0, 0, 1, 1], [], []>} : vector<8x64xf32>, vector<64x32xf32>, vector<8x32xf32> -> vector<8x32xf32>
    %c0_7 = arith.constant 0 : index
    %c0_8 = arith.constant 0 : index
    %c0_9 = arith.constant 0 : index
    %6 = vector.load %arg6[%c0_7, %c0_8, %c0_9] : memref<1x8x32xf32, #tpu.memory_space<vmem>>, vector<1x8x32xf32>
    %7 = vector.shape_cast %6 : vector<1x8x32xf32> to vector<8x32xf32>
    %8 = vector.shape_cast %5 : vector<8x32xf32> to vector<1x8x32xf32>
    tpu.vector_store %arg6[%c0_7, %c0_8, %c0_9], %8 {strides = array<i32>} : memref<1x8x32xf32, #tpu.memory_space<vmem>>, vector<1x8x32xf32>,
    %c0_10 = arith.constant 0 : index
    %c0_11 = arith.constant 0 : index
    %c0_12 = arith.constant 0 : index
    %9 = vector.load %arg6[%c0_10, %c0_11, %c0_12] : memref<1x8x32xf32, #tpu.memory_space<vmem>>, vector<1x8x32xf32>
    %10 = vector.shape_cast %9 : vector<1x8x32xf32> to vector<8x32xf32>
    %c0_13 = arith.constant 0 : index
    %c0_14 = arith.constant 0 : index
    %11 = vector.load %arg4[%c0_13, %c0_14] : memref<4x8xf32, #tpu.memory_space<vmem>>, vector<4x8xf32>
    %c0_15 = arith.constant 0 : index
    %c0_16 = arith.constant 0 : index
    %12 = vector.load %arg5[%c0_15, %c0_16] : memref<32x16xf32, #tpu.memory_space<vmem>>, vector<32x16xf32>
    %cst_17 = arith.constant dense<0.000000e+00> : vector<4x32xf32>
    %13 = tpu.matmul %11, %10, %cst_17 {dimension_numbers = #tpu.dot_dimension_numbers<[1], [0], [0], [1], [0, 0, 1, 1], [], []>} : vector<4x8xf32>, vector<8x32xf32>, vector<4x32xf32> -> vector<4x32xf32>
    %cst_18 = arith.constant dense<0.000000e+00> : vector<4x16xf32>
    %14 = tpu.matmul %13, %12, %cst_18 {dimension_numbers = #tpu.dot_dimension_numbers<[1], [0], [0], [1], [0, 0, 1, 1], [], []>} : vector<4x32xf32>, vector<32x16xf32>, vector<4x16xf32> -> vector<4x16xf32>
    %c0_19 = arith.constant 0 : index
    %c0_20 = arith.constant 0 : index
    %c0_21 = arith.constant 0 : index
    %15 = vector.load %arg7[%c0_19, %c0_20, %c0_21] : memref<1x4x16xf32, #tpu.memory_space<vmem>>, vector<1x4x16xf32>
    %16 = vector.shape_cast %15 : vector<1x4x16xf32> to vector<4x16xf32>
    %17 = vector.shape_cast %14 : vector<4x16xf32> to vector<1x4x16xf32>
    tpu.vector_store %arg7[%c0_19, %c0_20, %c0_21], %17 {strides = array<i32>} : memref<1x4x16xf32, #tpu.memory_space<vmem>>, vector<1x4x16xf32>,
    return
  }
  func.func @transform_0(%arg0: i32) -> (i32, i32, i32) {
    %c0_i32 = arith.constant 0 : i32
    %c0_i32_0 = arith.constant 0 : i32
    %c0_i32_1 = arith.constant 0 : i32
    return %arg0, %c0_i32, %c0_i32_0 : i32, i32, i32
  }
  func.func @transform_1(%arg0: i32) -> (i32, i32) {
    %c0_i32 = arith.constant 0 : i32
    %c0_i32_0 = arith.constant 0 : i32
    %c0_i32_1 = arith.constant 0 : i32
    return %c0_i32, %c0_i32_0 : i32, i32
  }
  func.func @transform_2(%arg0: i32) -> (i32, i32) {
    %c0_i32 = arith.constant 0 : i32
    %c0_i32_0 = arith.constant 0 : i32
    %c0_i32_1 = arith.constant 0 : i32
    return %c0_i32, %c0_i32_0 : i32, i32
  }
  func.func @transform_3(%arg0: i32) -> (i32, i32) {
    %c0_i32 = arith.constant 0 : i32
    %c0_i32_0 = arith.constant 0 : i32
    %c0_i32_1 = arith.constant 0 : i32
    return %c0_i32, %c0_i32_0 : i32, i32
  }
  func.func @transform_4(%arg0: i32) -> (i32, i32) {
    %c0_i32 = arith.constant 0 : i32
    %c0_i32_0 = arith.constant 0 : i32
    %c0_i32_1 = arith.constant 0 : i32
    return %c0_i32, %c0_i32_0 : i32, i32
  }
  func.func @transform_5(%arg0: i32) -> (i32, i32, i32) {
    %c0_i32 = arith.constant 0 : i32
    %c0_i32_0 = arith.constant 0 : i32
    %c0_i32_1 = arith.constant 0 : i32
    return %arg0, %c0_i32, %c0_i32_0 : i32, i32, i32
  }
  func.func @transform_6(%arg0: i32) -> (i32, i32, i32) {
    %c0_i32 = arith.constant 0 : i32
    %c0_i32_0 = arith.constant 0 : i32
    %c0_i32_1 = arith.constant 0 : i32
    return %arg0, %c0_i32, %c0_i32_0 : i32, i32, i32
  }
}

</mosaic_0001>

<llo_original>
// kernel: tpu_custom_call.1
$region0: #{tpu_custom_call.1}
  #allocation0 [shape = 'u32[]', space=smem, size = 0x4, offset = 0x4, fixed_abs, tag = 'smem constant byte address 0x4 - core index']
  #allocation1 [shape = 'u32[144,128]{1,0:T(1,128)}', space=vmem, size = 0x12000, scoped, tag = 'internal scratch']
  %s0 = inlined_call_operand.vmem [shape: f32[2,16,64], index: 0, kind: input, shape index: {}]
  %s1 = inlined_call_operand.vmem [shape: f32[8,16], index: 1, kind: input, shape index: {}]
  %s2 = inlined_call_operand.vmem [shape: f32[64,32], index: 2, kind: input, shape index: {}]
  %s3 = inlined_call_operand.vmem [shape: f32[4,8], index: 3, kind: input, shape index: {}]
  %s4 = inlined_call_operand.vmem [shape: f32[32,16], index: 4, kind: input, shape index: {}]
  %s5 = inlined_call_operand.hbm [shape: f32[2,8,32], index: 5, kind: output, shape index: {0}]
  %s6 = inlined_call_operand.hbm [shape: f32[2,4,16], index: 6, kind: output, shape index: {1}]
  %7 = xla_tuple %s5, %s6
  %s8 = sld [smem:[#allocation0]]
  $region61: #{tpu_custom_call.1} parent=0
    _
  %s10 = ssub.s32 1, %s8
  %s11 = scalar_select 0, %s10, %s8
  $region1: #{tpu_custom_call.1} parent=0
    #allocation2 [shape = 'u8[8192]{0}', space=vmem, size = 0x2000, scoped, tag = 'output window, operand 0']
    #allocation3 [shape = 's32[2]{0}', space=sflag, size = 0x8, scoped, tag = 'scoped memory for tpu_custom_call.1']
    #allocation4 [shape = 'u8[4096]{0}', space=vmem, size = 0x1000, scoped, tag = 'output window, operand 1']
    #allocation5 [shape = 's32[2]{0}', space=sflag, size = 0x8, scoped, tag = 'scoped memory for tpu_custom_call.1']
    %12 = vsyncpa [#allocation3], 0
    %s13 = scalar_lea.sflag [#allocation3], 1
    %14 = vsyncpa %s13, 0
    %15 = vsyncpa [#allocation5], 0
    %s16 = scalar_lea.sflag [#allocation5], 1
    %17 = vsyncpa %s16, 0
    loop: start=0, step=1, limit=4
    $region2: #{tpu_custom_call.1} parent=1 // loop_pre_header
      _
    $region3: #{tpu_custom_call.1} parent=1 // loop_header
      %s19 = sphi 0, %s23
      %p20 = scmp.ge.s32.totalorder %s19, 4
      %s29 = sphi 0, %s31
      %s32 = sphi 0, %s29
      %s33 = sphi 0, %s32
      %s49 = sphi 0, %s33
      %s53 = sphi 0, %s53
      %s55 = sphi 0, %s53
      %s56 = sphi 0, %s55
      %s70 = sphi 0, %s56
      %s74 = sphi 0, %s74
      %s76 = sphi 0, %s74
      %s77 = sphi 0, %s76
      %s91 = sphi 0, %s77
      %s95 = sphi 0, %s95
      %s97 = sphi 0, %s95
      %s98 = sphi 0, %s97
      %s112 = sphi 0, %s98
      %s116 = sphi 0, %s116
      %s118 = sphi 0, %s116
      %s119 = sphi 0, %s118
      %s133 = sphi 0, %s119
      %s139 = sphi 0, %s141
      %s142 = sphi 0, %s139
      %s143 = sphi 0, %s142
      %s159 = sphi 0, %s143
      %s165 = sphi 0, %s167
      %s168 = sphi 0, %s165
      %s169 = sphi 0, %s168
      %s185 = sphi 0, %s169
    $region4: #{tpu_custom_call.1} parent=1 // loop_header_branch
      %22 = sbr.rel (%p20) target = $region8
    $region5: #{tpu_custom_call.1} parent=1 // loop_body
      %s24 = ssub.s32 %s19, 1
      %s25 = ssub.s32 %s19, 2
      %s26 = sadd.s32 %s19, 1
      %s27 = ssub.s32 %s19, %s26
      %p28 = scmp.eq.s32.totalorder %s27, 0
      %s30 = sadd.s32 %s29, 1
      %s31 = scalar_select %p28, %s29, %s30
      %p34 = pneg %p28
      %p35 = scmp.eq.s32.totalorder %s19, 1
      %p36 = por %p34, %p35
      %p37 = scmp.ne.s32.totalorder %s29, %s32
      %p38 = scmp.eq.s32.totalorder %s19, 0
      %p39 = por %p37, %p38
      %p40 = scmp.ne.s32.totalorder %s29, %s32
      %p41 = scmp.eq.s32.totalorder %s24, 1
      %p42 = por %p40, %p41
      %p43 = scmp.ne.s32.totalorder %s32, %s33
      %p44 = scmp.eq.s32.totalorder %s24, 0
      %p45 = por %p43, %p44
      %p46 = scmp.ne.s32.totalorder %s32, %s33
      %p47 = scmp.eq.s32.totalorder %s25, 1
      %p48 = por %p46, %p47
      %p50 = scmp.ne.s32.totalorder %s33, %s49
      %p51 = scmp.eq.s32.totalorder %s25, 0
      %p52 = por %p50, %p51
      %s54 = sadd.s32 %s53, 1
      %p57 = scmp.eq.s32.totalorder %s19, 1
      %p58 = scmp.ne.s32.totalorder %s53, %s55
      %p59 = scmp.eq.s32.totalorder %s19, 0
      %p60 = por %p58, %p59
      %p61 = scmp.ne.s32.totalorder %s53, %s55
      %p62 = scmp.eq.s32.totalorder %s24, 1
      %p63 = por %p61, %p62
      %p64 = scmp.ne.s32.totalorder %s55, %s56
      %p65 = scmp.eq.s32.totalorder %s24, 0
      %p66 = por %p64, %p65
      %p67 = scmp.ne.s32.totalorder %s55, %s56
      %p68 = scmp.eq.s32.totalorder %s25, 1
      %p69 = por %p67, %p68
      %p71 = scmp.ne.s32.totalorder %s56, %s70
      %p72 = scmp.eq.s32.totalorder %s25, 0
      %p73 = por %p71, %p72
      %s75 = sadd.s32 %s74, 1
      %p78 = scmp.eq.s32.totalorder %s19, 1
      %p79 = scmp.ne.s32.totalorder %s74, %s76
      %p80 = scmp.eq.s32.totalorder %s19, 0
      %p81 = por %p79, %p80
      %p82 = scmp.ne.s32.totalorder %s74, %s76
      %p83 = scmp.eq.s32.totalorder %s24, 1
      %p84 = por %p82, %p83
      %p85 = scmp.ne.s32.totalorder %s76, %s77
      %p86 = scmp.eq.s32.totalorder %s24, 0
      %p87 = por %p85, %p86
      %p88 = scmp.ne.s32.totalorder %s76, %s77
      %p89 = scmp.eq.s32.totalorder %s25, 1
      %p90 = por %p88, %p89
      %p92 = scmp.ne.s32.totalorder %s77, %s91
      %p93 = scmp.eq.s32.totalorder %s25, 0
      %p94 = por %p92, %p93
      %s96 = sadd.s32 %s95, 1
      %p99 = scmp.eq.s32.totalorder %s19, 1
      %p100 = scmp.ne.s32.totalorder %s95, %s97
      %p101 = scmp.eq.s32.totalorder %s19, 0
      %p102 = por %p100, %p101
      %p103 = scmp.ne.s32.totalorder %s95, %s97
      %p104 = scmp.eq.s32.totalorder %s24, 1
      %p105 = por %p103, %p104
      %p106 = scmp.ne.s32.totalorder %s97, %s98
      %p107 = scmp.eq.s32.totalorder %s24, 0
      %p108 = por %p106, %p107
      %p109 = scmp.ne.s32.totalorder %s97, %s98
      %p110 = scmp.eq.s32.totalorder %s25, 1
      %p111 = por %p109, %p110
      %p113 = scmp.ne.s32.totalorder %s98, %s112
      %p114 = scmp.eq.s32.totalorder %s25, 0
      %p115 = por %p113, %p114
      %s117 = sadd.s32 %s116, 1
      %p120 = scmp.eq.s32.totalorder %s19, 1
      %p121 = scmp.ne.s32.totalorder %s116, %s118
      %p122 = scmp.eq.s32.totalorder %s19, 0
      %p123 = por %p121, %p122
      %p124 = scmp.ne.s32.totalorder %s116, %s118
      %p125 = scmp.eq.s32.totalorder %s24, 1
      %p126 = por %p124, %p125
      %p127 = scmp.ne.s32.totalorder %s118, %s119
      %p128 = scmp.eq.s32.totalorder %s24, 0
      %p129 = por %p127, %p128
      %p130 = scmp.ne.s32.totalorder %s118, %s119
      %p131 = scmp.eq.s32.totalorder %s25, 1
      %p132 = por %p130, %p131
      %p134 = scmp.ne.s32.totalorder %s119, %s133
      %p135 = scmp.eq.s32.totalorder %s25, 0
      %p136 = por %p134, %p135
      %s137 = ssub.s32 %s19, %s26
      %p138 = scmp.eq.s32.totalorder %s137, 0
      %s140 = sadd.s32 %s139, 1
      %s141 = scalar_select %p138, %s139, %s140
      %p144 = pneg %p138
      %p145 = scmp.eq.s32.totalorder %s19, 1
      %p146 = por %p144, %p145
      %p147 = scmp.ne.s32.totalorder %s139, %s142
      %p148 = scmp.eq.s32.totalorder %s19, 0
      %p149 = por %p147, %p148
      %p150 = scmp.ne.s32.totalorder %s139, %s142
      %p151 = scmp.eq.s32.totalorder %s24, 1
      %p152 = por %p150, %p151
      %p153 = scmp.ne.s32.totalorder %s142, %s143
      %p154 = scmp.eq.s32.totalorder %s24, 0
      %p155 = por %p153, %p154
      %p156 = scmp.ne.s32.totalorder %s142, %s143
      %p157 = scmp.eq.s32.totalorder %s25, 1
      %p158 = por %p156, %p157
      %p160 = scmp.ne.s32.totalorder %s143, %s159
      %p161 = scmp.eq.s32.totalorder %s25, 0
      %p162 = por %p160, %p161
      %s163 = ssub.s32 %s19, %s26
      %p164 = scmp.eq.s32.totalorder %s163, 0
      %s166 = sadd.s32 %s165, 1
      %s167 = scalar_select %p164, %s165, %s166
      %p170 = pneg %p164
      %p171 = scmp.eq.s32.totalorder %s19, 1
      %p172 = por %p170, %p171
      %p173 = scmp.ne.s32.totalorder %s165, %s168
      %p174 = scmp.eq.s32.totalorder %s19, 0
      %p175 = por %p173, %p174
      %p176 = scmp.ne.s32.totalorder %s165, %s168
      %p177 = scmp.eq.s32.totalorder %s24, 1
      %p178 = por %p176, %p177
      %p179 = scmp.ne.s32.totalorder %s168, %s169
      %p180 = scmp.eq.s32.totalorder %s24, 0
      %p181 = por %p179, %p180
      %p182 = scmp.ne.s32.totalorder %s168, %s169
      %p183 = scmp.eq.s32.totalorder %s25, 1
      %p184 = por %p182, %p183
      %p186 = scmp.ne.s32.totalorder %s169, %s185
      %p187 = scmp.eq.s32.totalorder %s25, 0
      %p188 = por %p186, %p187
      %p189 = scmp.le.s32.totalorder 1, %s19
      %p190 = scmp.lt.s32.totalorder %s19, 3
      %p191 = pnand %p189, %p190
      %p192 = pneg %p191
      // Predicated region
      $region9: #{tpu_custom_call.1} parent=5 // pred_check
        _
      $region10: #{tpu_custom_call.1} parent=5 // pred_check_branch
        %194 = sbr.rel (%p191) target = $region12
      $region11: #{tpu_custom_call.1} parent=5 // pred_region
        %s195 = ssub.s32 %s19, 1
        // Predicated region
        $region13: #{tpu_custom_call.1} parent=11 // pred_check
          %p196 = pneg %p66
        $region14: #{tpu_custom_call.1} parent=11 // pred_check_branch
          %198 = sbr.rel (%p196) target = $region16
        $region15: #{tpu_custom_call.1} parent=11 // pred_region
          _
        $region16: #{tpu_custom_call.1} parent=11 // pred_fallthru
          _
        // Predicated region
        $region17: #{tpu_custom_call.1} parent=11 // pred_check
          %p199 = pneg %p87
        $region18: #{tpu_custom_call.1} parent=11 // pred_check_branch
          %201 = sbr.rel (%p199) target = $region20
        $region19: #{tpu_custom_call.1} parent=11 // pred_region
          _
        $region20: #{tpu_custom_call.1} parent=11 // pred_fallthru
          _
        // Predicated region
        $region21: #{tpu_custom_call.1} parent=11 // pred_check
          %p202 = pneg %p108
        $region22: #{tpu_custom_call.1} parent=11 // pred_check_branch
          %204 = sbr.rel (%p202) target = $region24
        $region23: #{tpu_custom_call.1} parent=11 // pred_region
          _
        $region24: #{tpu_custom_call.1} parent=11 // pred_fallthru
          _
        // Predicated region
        $region25: #{tpu_custom_call.1} parent=11 // pred_check
          %p205 = pneg %p129
        $region26: #{tpu_custom_call.1} parent=11 // pred_check_branch
          %207 = sbr.rel (%p205) target = $region28
        $region27: #{tpu_custom_call.1} parent=11 // pred_region
          _
        $region28: #{tpu_custom_call.1} parent=11 // pred_fallthru
          _
      $region12: #{tpu_custom_call.1} parent=5 // pred_fallthru
        _
      %p208 = scmp.lt.s32.totalorder %s19, 2
      // Predicated region
      $region29: #{tpu_custom_call.1} parent=5 // pred_check
        %p209 = pneg %p208
      $region30: #{tpu_custom_call.1} parent=5 // pred_check_branch
        %211 = sbr.rel (%p209) target = $region32
      $region31: #{tpu_custom_call.1} parent=5 // pred_region
        // Predicated region
        $region33: #{tpu_custom_call.1} parent=31 // pred_check
          %p212 = pneg %p39
        $region34: #{tpu_custom_call.1} parent=31 // pred_check_branch
          %214 = sbr.rel (%p212) target = $region36
        $region35: #{tpu_custom_call.1} parent=31 // pred_region
          %p215 = scmp.lt.s32.totalorder %s19, 1
          %s216 = scalar_select %p215, %s19, 1
          %s217 = smul.addr %s216, 2
          %s218 = smul.addr %s217, 8
          %s219 = scalar_lea.vmem %s0, %s218
        $region36: #{tpu_custom_call.1} parent=31 // pred_fallthru
          _
      $region32: #{tpu_custom_call.1} parent=5 // pred_fallthru
        _
      %p220 = scmp.le.s32.totalorder 1, %s19
      %p221 = scmp.lt.s32.totalorder %s19, 3
      %p222 = pnand %p220, %p221
      %p223 = pneg %p222
      // Predicated region
      $region37: #{tpu_custom_call.1} parent=5 // pred_check
        _
      $region38: #{tpu_custom_call.1} parent=5 // pred_check_branch
        %225 = sbr.rel (%p222) target = $region40
      $region39: #{tpu_custom_call.1} parent=5 // pred_region
        %s226 = ssub.s32 %s19, 1
        %p227 = scmp.lt.s32.totalorder %s24, 1
        %s228 = scalar_select %p227, %s24, 1
        %s229 = smul.addr %s228, 2
        %s230 = smul.addr %s229, 8
        %s231 = scalar_lea.vmem %s0, %s230
        %p232 = pneg %p45
        %p233 = pneg %p42
        %p234 = pneg %p66
        %p235 = pneg %p63
        %p236 = pneg %p87
        %p237 = pneg %p84
        %p238 = pneg %p108
        %p239 = pneg %p105
        %p240 = pneg %p129
        %p241 = pneg %p126
        %p242 = pneg %p155
        %p243 = pneg %p152
        %s244 = sand.u32 %s142, 1
        %s245 = scalar_lea.sflag [#allocation3], %s244
        %s246 = sand.u32 %s142, 1
        %s247 = smul.addr %s246, 8
        %s248 = scalar_lea.vmem [#allocation2], %s247
        %p249 = pneg %p181
        %p250 = pneg %p178
        %s251 = sand.u32 %s168, 1
        %s252 = scalar_lea.sflag [#allocation5], %s251
        %s253 = sand.u32 %s168, 1
        %s254 = smul.addr %s253, 4
        %s255 = scalar_lea.vmem [#allocation4], %s254
        %p256 = scmp.lt.s32.totalorder %s24, 1
        %s257 = scalar_select %p256, %s24, 1
        %s258 = smul.addr %s257, 2
        %s259 = smul.addr %s258, 8
        %s260 = scalar_lea.vmem %s0, %s259
        %v261 = vld [vmem:[%s260] sm:$0xff]
        %v262 = vld [vmem:[%s260 + $0x8] sm:$0xff]
        %v263 = vld [vmem:[%s1] sm:$0xff]
        %v264 = vld [vmem:[%s2] sm:$0xff]
        %v265 = vld [vmem:[%s2 + $0x8] sm:$0xff]
        %v266 = vld [vmem:[%s2 + $0x10] sm:$0xff]
        %v267 = vld [vmem:[%s2 + $0x18] sm:$0xff]
        %v268 = vld [vmem:[%s2 + $0x20] sm:$0xff]
        %v269 = vld [vmem:[%s2 + $0x28] sm:$0xff]
        %v270 = vld [vmem:[%s2 + $0x30] sm:$0xff]
        %v271 = vld [vmem:[%s2 + $0x38] sm:$0xff]
        %vm272 = vcmask 130048
        %v274 = vsel %vm272, %v263, 0
        %276 = vmatprep.subr.mxu0 0.0
        %277 = vmatpush1.msra.mxu0 %v261
        %278 = vmatprep.subr.mxu0 0.0
        %279 = vmatpush1.msra.mxu0 %v262
        %280 = vmatprep.subr.mxu0 0.0
        %281 = vmatpush1.msra.mxu0 0.0
        %282 = vmatprep.subr.mxu0 0.0
        %283 = vmatpush1.msra.mxu0 0.0
        %284 = vmatprep.subr.mxu0 0.0
        %285 = vmatpush1.msra.mxu0 0.0
        %286 = vmatprep.subr.mxu0 0.0
        %287 = vmatpush1.msra.mxu0 0.0
        %288 = vmatprep.subr.mxu0 0.0
        %289 = vmatpush1.msra.mxu0 0.0
        %290 = vmatprep.subr.mxu0 0.0
        %291 = vmatpush1.msra.mxu0 0.0
        %292 = vmatprep.subr.mxu0 0.0
        %293 = vmatpush1.msra.mxu0 0.0
        %294 = vmatprep.subr.mxu0 0.0
        %295 = vmatpush1.msra.mxu0 0.0
        %296 = vmatprep.subr.mxu0 0.0
        %297 = vmatpush1.msra.mxu0 0.0
        %298 = vmatprep.subr.mxu0 0.0
        %299 = vmatpush1.msra.mxu0 0.0
        %300 = vmatprep.subr.mxu0 0.0
        %301 = vmatpush1.msra.mxu0 0.0
        %302 = vmatprep.subr.mxu0 0.0
        %303 = vmatpush1.msra.mxu0 0.0
        %304 = vmatprep.subr.mxu0 0.0
        %305 = vmatpush1.msra.mxu0 0.0
        %306 = vmatprep.subr.mxu0 0.0
        %307 = vmatpush1.msra.mxu0 0.0
        %308 = vmatprep.subr.mxu0 0.0
        %309 = vmatpush1.msra.mxu0 0.0
        %310 = vmatprep.subr.mxu0 0.0
        %311 = vmatpush1.msra.mxu0 0.0
        %312 = vmatprep.subr.mxu0 0.0
        %313 = vmatpush1.msra.mxu0 0.0
        %314 = vmatprep.subr.mxu0 0.0
        %315 = vmatpush1.msra.mxu0 0.0
        %316 = vmatprep.subr.mxu0 0.0
        %317 = vmatpush1.msra.mxu0 0.0
        %318 = vmatprep.subr.mxu0 0.0
        %319 = vmatpush1.msra.mxu0 0.0
        %320 = vmatprep.subr.mxu0 0.0
        %321 = vmatpush1.msra.mxu0 0.0
        %322 = vmatprep.subr.mxu0 0.0
        %323 = vmatpush1.msra.mxu0 0.0
        %324 = vmatprep.subr.mxu0 0.0
        %325 = vmatpush1.msra.mxu0 0.0
        %326 = vmatprep.subr.mxu0 0.0
        %327 = vmatpush1.msra.mxu0 0.0
        %328 = vmatprep.subr.mxu0 0.0
        %329 = vmatpush1.msra.mxu0 0.0
        %330 = vmatprep.subr.mxu0 0.0
        %331 = vmatpush1.msra.mxu0 0.0
        %332 = vmatprep.subr.mxu0 0.0
        %333 = vmatpush1.msra.mxu0 0.0
        %334 = vmatprep.subr.mxu0 0.0
        %335 = vmatpush1.msra.mxu0 0.0
        %336 = vmatprep.subr.mxu0 0.0
        %337 = vmatpush1.msra.mxu0 0.0
        %338 = vmatprep.subr.mxu0 0.0
        %339 = vmatpush1.msra.mxu0 0.0
        %340 = vmatprep.mubr.f32.mxu0 0.0
        %341 = vmatmul.mubr.f32.gmra.mrb[0].mxu0 %v274
        %v342 = vpop.f32.mrb[0].mxu0
        %v343 = vadd.f32 0.0, %v342
        %v344 = vpop.f32.mrb[0].mxu0
        %345 = vdwg.mxu0
        %vm346 = vcmask 523264
        %v348 = vsel %vm346, %v343, 0
        %350 = vmatprep.subr.mxu0 0.0
        %351 = vmatpush1.msra.mxu0 %v264
        %352 = vmatprep.subr.mxu0 0.0
        %353 = vmatpush1.msra.mxu0 %v265
        %354 = vmatprep.subr.mxu0 0.0
        %355 = vmatpush1.msra.mxu0 %v266
        %356 = vmatprep.subr.mxu0 0.0
        %357 = vmatpush1.msra.mxu0 %v267
        %358 = vmatprep.subr.mxu0 0.0
        %359 = vmatpush1.msra.mxu0 %v268
        %360 = vmatprep.subr.mxu0 0.0
        %361 = vmatpush1.msra.mxu0 %v269
        %362 = vmatprep.subr.mxu0 0.0
        %363 = vmatpush1.msra.mxu0 %v270
        %364 = vmatprep.subr.mxu0 0.0
        %365 = vmatpush1.msra.mxu0 %v271
        %366 = vmatprep.subr.mxu0 0.0
        %367 = vmatpush1.msra.mxu0 0.0
        %368 = vmatprep.subr.mxu0 0.0
        %369 = vmatpush1.msra.mxu0 0.0
        %370 = vmatprep.subr.mxu0 0.0
        %371 = vmatpush1.msra.mxu0 0.0
        %372 = vmatprep.subr.mxu0 0.0
        %373 = vmatpush1.msra.mxu0 0.0
        %374 = vmatprep.subr.mxu0 0.0
        %375 = vmatpush1.msra.mxu0 0.0
        %376 = vmatprep.subr.mxu0 0.0
        %377 = vmatpush1.msra.mxu0 0.0
        %378 = vmatprep.subr.mxu0 0.0
        %379 = vmatpush1.msra.mxu0 0.0
        %380 = vmatprep.subr.mxu0 0.0
        %381 = vmatpush1.msra.mxu0 0.0
        %382 = vmatprep.subr.mxu0 0.0
        %383 = vmatpush1.msra.mxu0 0.0
        %384 = vmatprep.subr.mxu0 0.0
        %385 = vmatpush1.msra.mxu0 0.0
        %386 = vmatprep.subr.mxu0 0.0
        %387 = vmatpush1.msra.mxu0 0.0
        %388 = vmatprep.subr.mxu0 0.0
        %389 = vmatpush1.msra.mxu0 0.0
        %390 = vmatprep.subr.mxu0 0.0
        %391 = vmatpush1.msra.mxu0 0.0
        %392 = vmatprep.subr.mxu0 0.0
        %393 = vmatpush1.msra.mxu0 0.0
        %394 = vmatprep.subr.mxu0 0.0
        %395 = vmatpush1.msra.mxu0 0.0
        %396 = vmatprep.subr.mxu0 0.0
        %397 = vmatpush1.msra.mxu0 0.0
        %398 = vmatprep.subr.mxu0 0.0
        %399 = vmatpush1.msra.mxu0 0.0
        %400 = vmatprep.subr.mxu0 0.0
        %401 = vmatpush1.msra.mxu0 0.0
        %402 = vmatprep.subr.mxu0 0.0
        %403 = vmatpush1.msra.mxu0 0.0
        %404 = vmatprep.subr.mxu0 0.0
        %405 = vmatpush1.msra.mxu0 0.0
        %406 = vmatprep.subr.mxu0 0.0
        %407 = vmatpush1.msra.mxu0 0.0
        %408 = vmatprep.subr.mxu0 0.0
        %409 = vmatpush1.msra.mxu0 0.0
        %410 = vmatprep.subr.mxu0 0.0
        %411 = vmatpush1.msra.mxu0 0.0
        %412 = vmatprep.subr.mxu0 0.0
        %413 = vmatpush1.msra.mxu0 0.0
        %414 = vmatprep.mubr.f32.mxu0 0.0
        %415 = vmatmul.mubr.f32.gmra.mrb[0].mxu0 %v348
        %v416 = vpop.f32.mrb[0].mxu0
        %v417 = vadd.f32 0.0, %v416
        %v418 = vpop.f32.mrb[0].mxu0
        %419 = vdwg.mxu0
        %vm420 = vcmask 261120
        %421 = vst.msk [vmem:[%s248] sm:$0xff] %vm420, %v417
        %v422 = vld [vmem:[%s248] sm:$0xff]
        %v423 = vld [vmem:[%s3] sm:$0xf]
        %v424 = vld [vmem:[%s4] sm:$0xff]
        %v425 = vld [vmem:[%s4 + $0x8] sm:$0xff]
        %v426 = vld [vmem:[%s4 + $0x10] sm:$0xff]
        %v427 = vld [vmem:[%s4 + $0x18] sm:$0xff]
        %vm428 = vcmask 64512
        %v430 = vsel %vm428, %v423, 0
        %432 = vmatprep.subr.mxu0 0.0
        %433 = vmatpush1.msra.mxu0 %v422
        %434 = vmatprep.subr.mxu0 0.0
        %435 = vmatpush1.msra.mxu0 0.0
        %436 = vmatprep.subr.mxu0 0.0
        %437 = vmatpush1.msra.mxu0 0.0
        %438 = vmatprep.subr.mxu0 0.0
        %439 = vmatpush1.msra.mxu0 0.0
        %440 = vmatprep.subr.mxu0 0.0
        %441 = vmatpush1.msra.mxu0 0.0
        %442 = vmatprep.subr.mxu0 0.0
        %443 = vmatpush1.msra.mxu0 0.0
        %444 = vmatprep.subr.mxu0 0.0
        %445 = vmatpush1.msra.mxu0 0.0
        %446 = vmatprep.subr.mxu0 0.0
        %447 = vmatpush1.msra.mxu0 0.0
        %448 = vmatprep.subr.mxu0 0.0
        %449 = vmatpush1.msra.mxu0 0.0
        %450 = vmatprep.subr.mxu0 0.0
        %451 = vmatpush1.msra.mxu0 0.0
        %452 = vmatprep.subr.mxu0 0.0
        %453 = vmatpush1.msra.mxu0 0.0
        %454 = vmatprep.subr.mxu0 0.0
        %455 = vmatpush1.msra.mxu0 0.0
        %456 = vmatprep.subr.mxu0 0.0
        %457 = vmatpush1.msra.mxu0 0.0
        %458 = vmatprep.subr.mxu0 0.0
        %459 = vmatpush1.msra.mxu0 0.0
        %460 = vmatprep.subr.mxu0 0.0
        %461 = vmatpush1.msra.mxu0 0.0
        %462 = vmatprep.subr.mxu0 0.0
        %463 = vmatpush1.msra.mxu0 0.0
        %464 = vmatprep.subr.mxu0 0.0
        %465 = vmatpush1.msra.mxu0 0.0
        %466 = vmatprep.subr.mxu0 0.0
        %467 = vmatpush1.msra.mxu0 0.0
        %468 = vmatprep.subr.mxu0 0.0
        %469 = vmatpush1.msra.mxu0 0.0
        %470 = vmatprep.subr.mxu0 0.0
        %471 = vmatpush1.msra.mxu0 0.0
        %472 = vmatprep.subr.mxu0 0.0
        %473 = vmatpush1.msra.mxu0 0.0
        %474 = vmatprep.subr.mxu0 0.0
        %475 = vmatpush1.msra.mxu0 0.0
        %476 = vmatprep.subr.mxu0 0.0
        %477 = vmatpush1.msra.mxu0 0.0
        %478 = vmatprep.subr.mxu0 0.0
        %479 = vmatpush1.msra.mxu0 0.0
        %480 = vmatprep.subr.mxu0 0.0
        %481 = vmatpush1.msra.mxu0 0.0
        %482 = vmatprep.subr.mxu0 0.0
        %483 = vmatpush1.msra.mxu0 0.0
        %484 = vmatprep.subr.mxu0 0.0
        %485 = vmatpush1.msra.mxu0 0.0
        %486 = vmatprep.subr.mxu0 0.0
        %487 = vmatpush1.msra.mxu0 0.0
        %488 = vmatprep.subr.mxu0 0.0
        %489 = vmatpush1.msra.mxu0 0.0
        %490 = vmatprep.subr.mxu0 0.0
        %491 = vmatpush1.msra.mxu0 0.0
        %492 = vmatprep.subr.mxu0 0.0
        %493 = vmatpush1.msra.mxu0 0.0
        %494 = vmatprep.subr.mxu0 0.0
        %495 = vmatpush1.msra.mxu0 0.0
        %496 = vmatprep.mubr.f32.mxu0 0.0
        %497 = vmatmul.mubr.f32.gmra.mrb[0].mxu0 %v430
        %v498 = vpop.f32.mrb[0].mxu0
        %v499 = vadd.f32 0.0, %v498
        %v500 = vpop.f32.mrb[0].mxu0
        %501 = vdwg.mxu0
        %v503 = vsel %vm420, %v499, 0
        %505 = vmatprep.subr.mxu0 0.0
        %506 = vmatpush1.msra.mxu0 %v424
        %507 = vmatprep.subr.mxu0 0.0
        %508 = vmatpush1.msra.mxu0 %v425
        %509 = vmatprep.subr.mxu0 0.0
        %510 = vmatpush1.msra.mxu0 %v426
        %511 = vmatprep.subr.mxu0 0.0
        %512 = vmatpush1.msra.mxu0 %v427
        %513 = vmatprep.subr.mxu0 0.0
        %514 = vmatpush1.msra.mxu0 0.0
        %515 = vmatprep.subr.mxu0 0.0
        %516 = vmatpush1.msra.mxu0 0.0
        %517 = vmatprep.subr.mxu0 0.0
        %518 = vmatpush1.msra.mxu0 0.0
        %519 = vmatprep.subr.mxu0 0.0
        %520 = vmatpush1.msra.mxu0 0.0
        %521 = vmatprep.subr.mxu0 0.0
        %522 = vmatpush1.msra.mxu0 0.0
        %523 = vmatprep.subr.mxu0 0.0
        %524 = vmatpush1.msra.mxu0 0.0
        %525 = vmatprep.subr.mxu0 0.0
        %526 = vmatpush1.msra.mxu0 0.0
        %527 = vmatprep.subr.mxu0 0.0
        %528 = vmatpush1.msra.mxu0 0.0
        %529 = vmatprep.subr.mxu0 0.0
        %530 = vmatpush1.msra.mxu0 0.0
        %531 = vmatprep.subr.mxu0 0.0
        %532 = vmatpush1.msra.mxu0 0.0
        %533 = vmatprep.subr.mxu0 0.0
        %534 = vmatpush1.msra.mxu0 0.0
        %535 = vmatprep.subr.mxu0 0.0
        %536 = vmatpush1.msra.mxu0 0.0
        %537 = vmatprep.subr.mxu0 0.0
        %538 = vmatpush1.msra.mxu0 0.0
        %539 = vmatprep.subr.mxu0 0.0
        %540 = vmatpush1.msra.mxu0 0.0
        %541 = vmatprep.subr.mxu0 0.0
        %542 = vmatpush1.msra.mxu0 0.0
        %543 = vmatprep.subr.mxu0 0.0
        %544 = vmatpush1.msra.mxu0 0.0
        %545 = vmatprep.subr.mxu0 0.0
        %546 = vmatpush1.msra.mxu0 0.0
        %547 = vmatprep.subr.mxu0 0.0
        %548 = vmatpush1.msra.mxu0 0.0
        %549 = vmatprep.subr.mxu0 0.0
        %550 = vmatpush1.msra.mxu0 0.0
        %551 = vmatprep.subr.mxu0 0.0
        %552 = vmatpush1.msra.mxu0 0.0
        %553 = vmatprep.subr.mxu0 0.0
        %554 = vmatpush1.msra.mxu0 0.0
        %555 = vmatprep.subr.mxu0 0.0
        %556 = vmatpush1.msra.mxu0 0.0
        %557 = vmatprep.subr.mxu0 0.0
        %558 = vmatpush1.msra.mxu0 0.0
        %559 = vmatprep.subr.mxu0 0.0
        %560 = vmatpush1.msra.mxu0 0.0
        %561 = vmatprep.subr.mxu0 0.0
        %562 = vmatpush1.msra.mxu0 0.0
        %563 = vmatprep.subr.mxu0 0.0
        %564 = vmatpush1.msra.mxu0 0.0
        %565 = vmatprep.subr.mxu0 0.0
        %566 = vmatpush1.msra.mxu0 0.0
        %567 = vmatprep.subr.mxu0 0.0
        %568 = vmatpush1.msra.mxu0 0.0
        %569 = vmatprep.mubr.f32.mxu0 0.0
        %570 = vmatmul.mubr.f32.gmra.mrb[0].mxu0 %v503
        %v571 = vpop.f32.mrb[0].mxu0
        %v572 = vadd.f32 0.0, %v571
        %v573 = vpop.f32.mrb[0].mxu0
        %574 = vdwg.mxu0
        %vm575 = vcmask 125952
        %576 = vst.msk [vmem:[%s255] sm:$0xf] %vm575, %v572
        %s577 = sand.u32 %s142, 1
        %s578 = scalar_lea.sflag [#allocation3], %s577
        %s579 = sand.u32 %s142, 1
        %s580 = smul.addr %s579, 8
        %s581 = scalar_lea.vmem [#allocation2], %s580
        %s582 = sand.u32 %s168, 1
        %s583 = scalar_lea.sflag [#allocation5], %s582
        %s584 = sand.u32 %s168, 1
        %s585 = smul.addr %s584, 4
        %s586 = scalar_lea.vmem [#allocation4], %s585
        // Predicated region
        $region41: #{tpu_custom_call.1} parent=39 // pred_check
          %p587 = pneg %p152
        $region42: #{tpu_custom_call.1} parent=39 // pred_check_branch
          %589 = sbr.rel (%p587) target = $region44
        $region43: #{tpu_custom_call.1} parent=39 // pred_region
          %s591 = ssub.s32 128, 128
          %592 = vsyncadd %s578, %s591
          %s593 = smul.addr %s24, 128
          %s594 = scalar_lea.hbm %s5, %s593
          %s596 = sshll.u32 %s581, 4
          %s597 = int_to_ptr.vmem [resolvable:$true] %s596
          %599 = dma.vmem_to_hbm [thread:$0]  %s597, 128, %s594, %s578
        $region44: #{tpu_custom_call.1} parent=39 // pred_fallthru
          _
        // Predicated region
        $region45: #{tpu_custom_call.1} parent=39 // pred_check
          %p600 = pneg %p178
        $region46: #{tpu_custom_call.1} parent=39 // pred_check_branch
          %602 = sbr.rel (%p600) target = $region48
        $region47: #{tpu_custom_call.1} parent=39 // pred_region
          %s604 = ssub.s32 64, 64
          %605 = vsyncadd %s583, %s604
          %s606 = smul.addr %s24, 64
          %s607 = scalar_lea.hbm %s6, %s606
          %s609 = sshll.u32 %s586, 4
          %s610 = int_to_ptr.vmem [resolvable:$true] %s609
          %612 = dma.vmem_to_hbm [thread:$0]  %s610, 64, %s607, %s583
        $region48: #{tpu_custom_call.1} parent=39 // pred_fallthru
          _
      $region40: #{tpu_custom_call.1} parent=5 // pred_fallthru
        _
      %p613 = scmp.le.s32.totalorder 2, %s19
      // Predicated region
      $region49: #{tpu_custom_call.1} parent=5 // pred_check
        %p614 = pneg %p613
      $region50: #{tpu_custom_call.1} parent=5 // pred_check_branch
        %616 = sbr.rel (%p614) target = $region52
      $region51: #{tpu_custom_call.1} parent=5 // pred_region
        %s617 = ssub.s32 %s19, 2
        // Predicated region
        $region53: #{tpu_custom_call.1} parent=51 // pred_check
          %p618 = pneg %p158
        $region54: #{tpu_custom_call.1} parent=51 // pred_check_branch
          %620 = sbr.rel (%p618) target = $region56
        $region55: #{tpu_custom_call.1} parent=51 // pred_region
          %s621 = sand.u32 %s143, 1
          %s622 = scalar_lea.sflag [#allocation3], %s621
          %s623 = sand.u32 %s143, 1
          %s624 = smul.addr %s623, 8
          %s625 = scalar_lea.vmem [#allocation2], %s624
          %626 = dma.done %s622, 128
        $region56: #{tpu_custom_call.1} parent=51 // pred_fallthru
          _
        // Predicated region
        $region57: #{tpu_custom_call.1} parent=51 // pred_check
          %p627 = pneg %p184
        $region58: #{tpu_custom_call.1} parent=51 // pred_check_branch
          %629 = sbr.rel (%p627) target = $region60
        $region59: #{tpu_custom_call.1} parent=51 // pred_region
          %s630 = sand.u32 %s169, 1
          %s631 = scalar_lea.sflag [#allocation5], %s630
          %s632 = sand.u32 %s169, 1
          %s633 = smul.addr %s632, 4
          %s634 = scalar_lea.vmem [#allocation4], %s633
          %635 = dma.done %s631, 64
        $region60: #{tpu_custom_call.1} parent=51 // pred_fallthru
          _
      $region52: #{tpu_custom_call.1} parent=5 // pred_fallthru
        _
    $region6: #{tpu_custom_call.1} parent=1 // loop_footer
      %s23 = sadd.s32 1, %s19
    $region7: #{tpu_custom_call.1} parent=1 // loop_footer_branch
      %18 = sbr.rel target = $region3
    $region8: #{tpu_custom_call.1} parent=1 // loop_exit
      _
    %636 = vsyncpa [#allocation3], 1
    %s637 = scalar_lea.sflag [#allocation3], 1
    %638 = vsyncpa %s637, 1
    %639 = vsyncpa [#allocation5], 1
    %s640 = scalar_lea.sflag [#allocation5], 1
    %641 = vsyncpa %s640, 1

// kernel: tpu_custom_call.1
$region0: #{tpu_custom_call.1}
  #allocation0 [shape = 'u32[]', space=smem, size = 0x4, offset = 0x4, fixed_abs, tag = 'smem constant byte address 0x4 - core index']
  #allocation1 [shape = 'u32[144,128]{1,0:T(1,128)}', space=vmem, size = 0x12000, scoped, tag = 'internal scratch']
  %s0 = inlined_call_operand.vmem [shape: f32[2,16,64], index: 0, kind: input, shape index: {}]
  %s1 = inlined_call_operand.vmem [shape: f32[8,16], index: 1, kind: input, shape index: {}]
  %s2 = inlined_call_operand.vmem [shape: f32[64,32], index: 2, kind: input, shape index: {}]
  %s3 = inlined_call_operand.vmem [shape: f32[4,8], index: 3, kind: input, shape index: {}]
  %s4 = inlined_call_operand.vmem [shape: f32[32,16], index: 4, kind: input, shape index: {}]
  %s5 = inlined_call_operand.hbm [shape: f32[2,8,32], index: 5, kind: output, shape index: {0}]
  %s6 = inlined_call_operand.hbm [shape: f32[2,4,16], index: 6, kind: output, shape index: {1}]
  %7 = xla_tuple %s5, %s6
  %s8 = sld [smem:[#allocation0]]
  $region61: #{tpu_custom_call.1} parent=0
    _
  %s10 = ssub.s32 1, %s8
  %s11 = scalar_select 0, %s10, %s8
  $region1: #{tpu_custom_call.1} parent=0
    #allocation2 [shape = 'u8[8192]{0}', space=vmem, size = 0x2000, scoped, tag = 'output window, operand 0']
    #allocation3 [shape = 's32[2]{0}', space=sflag, size = 0x8, scoped, tag = 'scoped memory for tpu_custom_call.1']
    #allocation4 [shape = 'u8[4096]{0}', space=vmem, size = 0x1000, scoped, tag = 'output window, operand 1']
    #allocation5 [shape = 's32[2]{0}', space=sflag, size = 0x8, scoped, tag = 'scoped memory for tpu_custom_call.1']
    %12 = vsyncpa [#allocation3], 0
    %s13 = scalar_lea.sflag [#allocation3], 1
    %14 = vsyncpa %s13, 0
    %15 = vsyncpa [#allocation5], 0
    %s16 = scalar_lea.sflag [#allocation5], 1
    %17 = vsyncpa %s16, 0
    loop: start=0, step=1, limit=4
    $region2: #{tpu_custom_call.1} parent=1 // loop_pre_header
      _
    $region3: #{tpu_custom_call.1} parent=1 // loop_header
      %s19 = sphi 0, %s23
      %p20 = scmp.ge.s32.totalorder %s19, 4
      %s29 = sphi 0, %s31
      %s32 = sphi 0, %s29
      %s33 = sphi 0, %s32
      %s49 = sphi 0, %s33
      %s53 = sphi 0, %s53
      %s55 = sphi 0, %s53
      %s56 = sphi 0, %s55
      %s70 = sphi 0, %s56
      %s74 = sphi 0, %s74
      %s76 = sphi 0, %s74
      %s77 = sphi 0, %s76
      %s91 = sphi 0, %s77
      %s95 = sphi 0, %s95
      %s97 = sphi 0, %s95
      %s98 = sphi 0, %s97
      %s112 = sphi 0, %s98
      %s116 = sphi 0, %s116
      %s118 = sphi 0, %s116
      %s119 = sphi 0, %s118
      %s133 = sphi 0, %s119
      %s139 = sphi 0, %s141
      %s142 = sphi 0, %s139
      %s143 = sphi 0, %s142
      %s159 = sphi 0, %s143
      %s165 = sphi 0, %s167
      %s168 = sphi 0, %s165
      %s169 = sphi 0, %s168
      %s185 = sphi 0, %s169
    $region4: #{tpu_custom_call.1} parent=1 // loop_header_branch
      %22 = sbr.rel (%p20) target = $region8
    $region5: #{tpu_custom_call.1} parent=1 // loop_body
      %s24 = ssub.s32 %s19, 1
      %s25 = ssub.s32 %s19, 2
      %s26 = sadd.s32 %s19, 1
      %s27 = ssub.s32 %s19, %s26
      %p28 = scmp.eq.s32.totalorder %s27, 0
      %s30 = sadd.s32 %s29, 1
      %s31 = scalar_select %p28, %s29, %s30
      %p34 = pneg %p28
      %p35 = scmp.eq.s32.totalorder %s19, 1
      %p36 = por %p34, %p35
      %p37 = scmp.ne.s32.totalorder %s29, %s32
      %p38 = scmp.eq.s32.totalorder %s19, 0
      %p39 = por %p37, %p38
      %p40 = scmp.ne.s32.totalorder %s29, %s32
      %p41 = scmp.eq.s32.totalorder %s24, 1
      %p42 = por %p40, %p41
      %p43 = scmp.ne.s32.totalorder %s32, %s33
      %p44 = scmp.eq.s32.totalorder %s24, 0
      %p45 = por %p43, %p44
      %p46 = scmp.ne.s32.totalorder %s32, %s33
      %p47 = scmp.eq.s32.totalorder %s25, 1
      %p48 = por %p46, %p47
      %p50 = scmp.ne.s32.totalorder %s33, %s49
      %p51 = scmp.eq.s32.totalorder %s25, 0
      %p52 = por %p50, %p51
      %s54 = sadd.s32 %s53, 1
      %p57 = scmp.eq.s32.totalorder %s19, 1
      %p58 = scmp.ne.s32.totalorder %s53, %s55
      %p59 = scmp.eq.s32.totalorder %s19, 0
      %p60 = por %p58, %p59
      %p61 = scmp.ne.s32.totalorder %s53, %s55
      %p62 = scmp.eq.s32.totalorder %s24, 1
      %p63 = por %p61, %p62
      %p64 = scmp.ne.s32.totalorder %s55, %s56
      %p65 = scmp.eq.s32.totalorder %s24, 0
      %p66 = por %p64, %p65
      %p67 = scmp.ne.s32.totalorder %s55, %s56
      %p68 = scmp.eq.s32.totalorder %s25, 1
      %p69 = por %p67, %p68
      %p71 = scmp.ne.s32.totalorder %s56, %s70
      %p72 = scmp.eq.s32.totalorder %s25, 0
      %p73 = por %p71, %p72
      %s75 = sadd.s32 %s74, 1
      %p78 = scmp.eq.s32.totalorder %s19, 1
      %p79 = scmp.ne.s32.totalorder %s74, %s76
      %p80 = scmp.eq.s32.totalorder %s19, 0
      %p81 = por %p79, %p80
      %p82 = scmp.ne.s32.totalorder %s74, %s76
      %p83 = scmp.eq.s32.totalorder %s24, 1
      %p84 = por %p82, %p83
      %p85 = scmp.ne.s32.totalorder %s76, %s77
      %p86 = scmp.eq.s32.totalorder %s24, 0
      %p87 = por %p85, %p86
      %p88 = scmp.ne.s32.totalorder %s76, %s77
      %p89 = scmp.eq.s32.totalorder %s25, 1
      %p90 = por %p88, %p89
      %p92 = scmp.ne.s32.totalorder %s77, %s91
      %p93 = scmp.eq.s32.totalorder %s25, 0
      %p94 = por %p92, %p93
      %s96 = sadd.s32 %s95, 1
      %p99 = scmp.eq.s32.totalorder %s19, 1
      %p100 = scmp.ne.s32.totalorder %s95, %s97
      %p101 = scmp.eq.s32.totalorder %s19, 0
      %p102 = por %p100, %p101
      %p103 = scmp.ne.s32.totalorder %s95, %s97
      %p104 = scmp.eq.s32.totalorder %s24, 1
      %p105 = por %p103, %p104
      %p106 = scmp.ne.s32.totalorder %s97, %s98
      %p107 = scmp.eq.s32.totalorder %s24, 0
      %p108 = por %p106, %p107
      %p109 = scmp.ne.s32.totalorder %s97, %s98
      %p110 = scmp.eq.s32.totalorder %s25, 1
      %p111 = por %p109, %p110
      %p113 = scmp.ne.s32.totalorder %s98, %s112
      %p114 = scmp.eq.s32.totalorder %s25, 0
      %p115 = por %p113, %p114
      %s117 = sadd.s32 %s116, 1
      %p120 = scmp.eq.s32.totalorder %s19, 1
      %p121 = scmp.ne.s32.totalorder %s116, %s118
      %p122 = scmp.eq.s32.totalorder %s19, 0
      %p123 = por %p121, %p122
      %p124 = scmp.ne.s32.totalorder %s116, %s118
      %p125 = scmp.eq.s32.totalorder %s24, 1
      %p126 = por %p124, %p125
      %p127 = scmp.ne.s32.totalorder %s118, %s119
      %p128 = scmp.eq.s32.totalorder %s24, 0
      %p129 = por %p127, %p128
      %p130 = scmp.ne.s32.totalorder %s118, %s119
      %p131 = scmp.eq.s32.totalorder %s25, 1
      %p132 = por %p130, %p131
      %p134 = scmp.ne.s32.totalorder %s119, %s133
      %p135 = scmp.eq.s32.totalorder %s25, 0
      %p136 = por %p134, %p135
      %s137 = ssub.s32 %s19, %s26
      %p138 = scmp.eq.s32.totalorder %s137, 0
      %s140 = sadd.s32 %s139, 1
      %s141 = scalar_select %p138, %s139, %s140
      %p144 = pneg %p138
      %p145 = scmp.eq.s32.totalorder %s19, 1
      %p146 = por %p144, %p145
      %p147 = scmp.ne.s32.totalorder %s139, %s142
      %p148 = scmp.eq.s32.totalorder %s19, 0
      %p149 = por %p147, %p148
      %p150 = scmp.ne.s32.totalorder %s139, %s142
      %p151 = scmp.eq.s32.totalorder %s24, 1
      %p152 = por %p150, %p151
      %p153 = scmp.ne.s32.totalorder %s142, %s143
      %p154 = scmp.eq.s32.totalorder %s24, 0
      %p155 = por %p153, %p154
      %p156 = scmp.ne.s32.totalorder %s142, %s143
      %p157 = scmp.eq.s32.totalorder %s25, 1
      %p158 = por %p156, %p157
      %p160 = scmp.ne.s32.totalorder %s143, %s159
      %p161 = scmp.eq.s32.totalorder %s25, 0
      %p162 = por %p160, %p161
      %s163 = ssub.s32 %s19, %s26
      %p164 = scmp.eq.s32.totalorder %s163, 0
      %s166 = sadd.s32 %s165, 1
      %s167 = scalar_select %p164, %s165, %s166
      %p170 = pneg %p164
      %p171 = scmp.eq.s32.totalorder %s19, 1
      %p172 = por %p170, %p171
      %p173 = scmp.ne.s32.totalorder %s165, %s168
      %p174 = scmp.eq.s32.totalorder %s19, 0
      %p175 = por %p173, %p174
      %p176 = scmp.ne.s32.totalorder %s165, %s168
      %p177 = scmp.eq.s32.totalorder %s24, 1
      %p178 = por %p176, %p177
      %p179 = scmp.ne.s32.totalorder %s168, %s169
      %p180 = scmp.eq.s32.totalorder %s24, 0
      %p181 = por %p179, %p180
      %p182 = scmp.ne.s32.totalorder %s168, %s169
      %p183 = scmp.eq.s32.totalorder %s25, 1
      %p184 = por %p182, %p183
      %p186 = scmp.ne.s32.totalorder %s169, %s185
      %p187 = scmp.eq.s32.totalorder %s25, 0
      %p188 = por %p186, %p187
      %p189 = scmp.le.s32.totalorder 1, %s19
      %p190 = scmp.lt.s32.totalorder %s19, 3
      %p191 = pnand %p189, %p190
      %p192 = pneg %p191
      // Predicated region
      $region9: #{tpu_custom_call.1} parent=5 // pred_check
        _
      $region10: #{tpu_custom_call.1} parent=5 // pred_check_branch
        %194 = sbr.rel (%p191) target = $region12
      $region11: #{tpu_custom_call.1} parent=5 // pred_region
        %s195 = ssub.s32 %s19, 1
        // Predicated region
        $region13: #{tpu_custom_call.1} parent=11 // pred_check
          %p196 = pneg %p66
        $region14: #{tpu_custom_call.1} parent=11 // pred_check_branch
          %198 = sbr.rel (%p196) target = $region16
        $region15: #{tpu_custom_call.1} parent=11 // pred_region
          _
        $region16: #{tpu_custom_call.1} parent=11 // pred_fallthru
          _
        // Predicated region
        $region17: #{tpu_custom_call.1} parent=11 // pred_check
          %p199 = pneg %p87
        $region18: #{tpu_custom_call.1} parent=11 // pred_check_branch
          %201 = sbr.rel (%p199) target = $region20
        $region19: #{tpu_custom_call.1} parent=11 // pred_region
          _
        $region20: #{tpu_custom_call.1} parent=11 // pred_fallthru
          _
        // Predicated region
        $region21: #{tpu_custom_call.1} parent=11 // pred_check
          %p202 = pneg %p108
        $region22: #{tpu_custom_call.1} parent=11 // pred_check_branch
          %204 = sbr.rel (%p202) target = $region24
        $region23: #{tpu_custom_call.1} parent=11 // pred_region
          _
        $region24: #{tpu_custom_call.1} parent=11 // pred_fallthru
          _
        // Predicated region
        $region25: #{tpu_custom_call.1} parent=11 // pred_check
          %p205 = pneg %p129
        $region26: #{tpu_custom_call.1} parent=11 // pred_check_branch
          %207 = sbr.rel (%p205) target = $region28
        $region27: #{tpu_custom_call.1} parent=11 // pred_region
          _
        $region28: #{tpu_custom_call.1} parent=11 // pred_fallthru
          _
      $region12: #{tpu_custom_call.1} parent=5 // pred_fallthru
        _
      %p208 = scmp.lt.s32.totalorder %s19, 2
      // Predicated region
      $region29: #{tpu_custom_call.1} parent=5 // pred_check
        %p209 = pneg %p208
      $region30: #{tpu_custom_call.1} parent=5 // pred_check_branch
        %211 = sbr.rel (%p209) target = $region32
      $region31: #{tpu_custom_call.1} parent=5 // pred_region
        // Predicated region
        $region33: #{tpu_custom_call.1} parent=31 // pred_check
          %p212 = pneg %p39
        $region34: #{tpu_custom_call.1} parent=31 // pred_check_branch
          %214 = sbr.rel (%p212) target = $region36
        $region35: #{tpu_custom_call.1} parent=31 // pred_region
          %p215 = scmp.lt.s32.totalorder %s19, 1
          %s216 = scalar_select %p215, %s19, 1
          %s217 = smul.addr %s216, 2
          %s218 = smul.addr %s217, 8
          %s219 = scalar_lea.vmem %s0, %s218
        $region36: #{tpu_custom_call.1} parent=31 // pred_fallthru
          _
      $region32: #{tpu_custom_call.1} parent=5 // pred_fallthru
        _
      %p220 = scmp.le.s32.totalorder 1, %s19
      %p221 = scmp.lt.s32.totalorder %s19, 3
      %p222 = pnand %p220, %p221
      %p223 = pneg %p222
      // Predicated region
      $region37: #{tpu_custom_call.1} parent=5 // pred_check
        _
      $region38: #{tpu_custom_call.1} parent=5 // pred_check_branch
        %225 = sbr.rel (%p222) target = $region40
      $region39: #{tpu_custom_call.1} parent=5 // pred_region
        %s226 = ssub.s32 %s19, 1
        %p227 = scmp.lt.s32.totalorder %s24, 1
        %s228 = scalar_select %p227, %s24, 1
        %s229 = smul.addr %s228, 2
        %s230 = smul.addr %s229, 8
        %s231 = scalar_lea.vmem %s0, %s230
        %p232 = pneg %p45
        %p233 = pneg %p42
        %p234 = pneg %p66
        %p235 = pneg %p63
        %p236 = pneg %p87
        %p237 = pneg %p84
        %p238 = pneg %p108
        %p239 = pneg %p105
        %p240 = pneg %p129
        %p241 = pneg %p126
        %p242 = pneg %p155
        %p243 = pneg %p152
        %s244 = sand.u32 %s142, 1
        %s245 = scalar_lea.sflag [#allocation3], %s244
        %s246 = sand.u32 %s142, 1
        %s247 = smul.addr %s246, 8
        %s248 = scalar_lea.vmem [#allocation2], %s247
        %p249 = pneg %p181
        %p250 = pneg %p178
        %s251 = sand.u32 %s168, 1
        %s252 = scalar_lea.sflag [#allocation5], %s251
        %s253 = sand.u32 %s168, 1
        %s254 = smul.addr %s253, 4
        %s255 = scalar_lea.vmem [#allocation4], %s254
        %p256 = scmp.lt.s32.totalorder %s24, 1
        %s257 = scalar_select %p256, %s24, 1
        %s258 = smul.addr %s257, 2
        %s259 = smul.addr %s258, 8
        %s260 = scalar_lea.vmem %s0, %s259
        %v261 = vld [vmem:[%s260] sm:$0xff]
        %v262 = vld [vmem:[%s260 + $0x8] sm:$0xff]
        %v263 = vld [vmem:[%s1] sm:$0xff]
        %v264 = vld [vmem:[%s2] sm:$0xff]
        %v265 = vld [vmem:[%s2 + $0x8] sm:$0xff]
        %v266 = vld [vmem:[%s2 + $0x10] sm:$0xff]
        %v267 = vld [vmem:[%s2 + $0x18] sm:$0xff]
        %v268 = vld [vmem:[%s2 + $0x20] sm:$0xff]
        %v269 = vld [vmem:[%s2 + $0x28] sm:$0xff]
        %v270 = vld [vmem:[%s2 + $0x30] sm:$0xff]
        %v271 = vld [vmem:[%s2 + $0x38] sm:$0xff]
        %vm272 = vcmask 130048
        %v274 = vsel %vm272, %v263, 0
        %276 = vmatprep.subr.mxu0 0.0
        %277 = vmatpush1.msra.mxu0 %v261
        %278 = vmatprep.subr.mxu0 0.0
        %279 = vmatpush1.msra.mxu0 %v262
        %280 = vmatprep.subr.mxu0 0.0
        %281 = vmatpush1.msra.mxu0 0.0
        %282 = vmatprep.subr.mxu0 0.0
        %283 = vmatpush1.msra.mxu0 0.0
        %284 = vmatprep.subr.mxu0 0.0
        %285 = vmatpush1.msra.mxu0 0.0
        %286 = vmatprep.subr.mxu0 0.0
        %287 = vmatpush1.msra.mxu0 0.0
        %288 = vmatprep.subr.mxu0 0.0
        %289 = vmatpush1.msra.mxu0 0.0
        %290 = vmatprep.subr.mxu0 0.0
        %291 = vmatpush1.msra.mxu0 0.0
        %292 = vmatprep.subr.mxu0 0.0
        %293 = vmatpush1.msra.mxu0 0.0
        %294 = vmatprep.subr.mxu0 0.0
        %295 = vmatpush1.msra.mxu0 0.0
        %296 = vmatprep.subr.mxu0 0.0
        %297 = vmatpush1.msra.mxu0 0.0
        %298 = vmatprep.subr.mxu0 0.0
        %299 = vmatpush1.msra.mxu0 0.0
        %300 = vmatprep.subr.mxu0 0.0
        %301 = vmatpush1.msra.mxu0 0.0
        %302 = vmatprep.subr.mxu0 0.0
        %303 = vmatpush1.msra.mxu0 0.0
        %304 = vmatprep.subr.mxu0 0.0
        %305 = vmatpush1.msra.mxu0 0.0
        %306 = vmatprep.subr.mxu0 0.0
        %307 = vmatpush1.msra.mxu0 0.0
        %308 = vmatprep.subr.mxu0 0.0
        %309 = vmatpush1.msra.mxu0 0.0
        %310 = vmatprep.subr.mxu0 0.0
        %311 = vmatpush1.msra.mxu0 0.0
        %312 = vmatprep.subr.mxu0 0.0
        %313 = vmatpush1.msra.mxu0 0.0
        %314 = vmatprep.subr.mxu0 0.0
        %315 = vmatpush1.msra.mxu0 0.0
        %316 = vmatprep.subr.mxu0 0.0
        %317 = vmatpush1.msra.mxu0 0.0
        %318 = vmatprep.subr.mxu0 0.0
        %319 = vmatpush1.msra.mxu0 0.0
        %320 = vmatprep.subr.mxu0 0.0
        %321 = vmatpush1.msra.mxu0 0.0
        %322 = vmatprep.subr.mxu0 0.0
        %323 = vmatpush1.msra.mxu0 0.0
        %324 = vmatprep.subr.mxu0 0.0
        %325 = vmatpush1.msra.mxu0 0.0
        %326 = vmatprep.subr.mxu0 0.0
        %327 = vmatpush1.msra.mxu0 0.0
        %328 = vmatprep.subr.mxu0 0.0
        %329 = vmatpush1.msra.mxu0 0.0
        %330 = vmatprep.subr.mxu0 0.0
        %331 = vmatpush1.msra.mxu0 0.0
        %332 = vmatprep.subr.mxu0 0.0
        %333 = vmatpush1.msra.mxu0 0.0
        %334 = vmatprep.subr.mxu0 0.0
        %335 = vmatpush1.msra.mxu0 0.0
        %336 = vmatprep.subr.mxu0 0.0
        %337 = vmatpush1.msra.mxu0 0.0
        %338 = vmatprep.subr.mxu0 0.0
        %339 = vmatpush1.msra.mxu0 0.0
        %340 = vmatprep.mubr.f32.mxu0 0.0
        %341 = vmatmul.mubr.f32.gmra.mrb[0].mxu0 %v274
        %v342 = vpop.f32.mrb[0].mxu0
        %v343 = vadd.f32 0.0, %v342
        %v344 = vpop.f32.mrb[0].mxu0
        %345 = vdwg.mxu0
        %vm346 = vcmask 523264
        %v348 = vsel %vm346, %v343, 0
        %350 = vmatprep.subr.mxu0 0.0
        %351 = vmatpush1.msra.mxu0 %v264
        %352 = vmatprep.subr.mxu0 0.0
        %353 = vmatpush1.msra.mxu0 %v265
        %354 = vmatprep.subr.mxu0 0.0
        %355 = vmatpush1.msra.mxu0 %v266
        %356 = vmatprep.subr.mxu0 0.0
        %357 = vmatpush1.msra.mxu0 %v267
        %358 = vmatprep.subr.mxu0 0.0
        %359 = vmatpush1.msra.mxu0 %v268
        %360 = vmatprep.subr.mxu0 0.0
        %361 = vmatpush1.msra.mxu0 %v269
        %362 = vmatprep.subr.mxu0 0.0
        %363 = vmatpush1.msra.mxu0 %v270
        %364 = vmatprep.subr.mxu0 0.0
        %365 = vmatpush1.msra.mxu0 %v271
        %366 = vmatprep.subr.mxu0 0.0
        %367 = vmatpush1.msra.mxu0 0.0
        %368 = vmatprep.subr.mxu0 0.0
        %369 = vmatpush1.msra.mxu0 0.0
        %370 = vmatprep.subr.mxu0 0.0
        %371 = vmatpush1.msra.mxu0 0.0
        %372 = vmatprep.subr.mxu0 0.0
        %373 = vmatpush1.msra.mxu0 0.0
        %374 = vmatprep.subr.mxu0 0.0
        %375 = vmatpush1.msra.mxu0 0.0
        %376 = vmatprep.subr.mxu0 0.0
        %377 = vmatpush1.msra.mxu0 0.0
        %378 = vmatprep.subr.mxu0 0.0
        %379 = vmatpush1.msra.mxu0 0.0
        %380 = vmatprep.subr.mxu0 0.0
        %381 = vmatpush1.msra.mxu0 0.0
        %382 = vmatprep.subr.mxu0 0.0
        %383 = vmatpush1.msra.mxu0 0.0
        %384 = vmatprep.subr.mxu0 0.0
        %385 = vmatpush1.msra.mxu0 0.0
        %386 = vmatprep.subr.mxu0 0.0
        %387 = vmatpush1.msra.mxu0 0.0
        %388 = vmatprep.subr.mxu0 0.0
        %389 = vmatpush1.msra.mxu0 0.0
        %390 = vmatprep.subr.mxu0 0.0
        %391 = vmatpush1.msra.mxu0 0.0
        %392 = vmatprep.subr.mxu0 0.0
        %393 = vmatpush1.msra.mxu0 0.0
        %394 = vmatprep.subr.mxu0 0.0
        %395 = vmatpush1.msra.mxu0 0.0
        %396 = vmatprep.subr.mxu0 0.0
        %397 = vmatpush1.msra.mxu0 0.0
        %398 = vmatprep.subr.mxu0 0.0
        %399 = vmatpush1.msra.mxu0 0.0
        %400 = vmatprep.subr.mxu0 0.0
        %401 = vmatpush1.msra.mxu0 0.0
        %402 = vmatprep.subr.mxu0 0.0
        %403 = vmatpush1.msra.mxu0 0.0
        %404 = vmatprep.subr.mxu0 0.0
        %405 = vmatpush1.msra.mxu0 0.0
        %406 = vmatprep.subr.mxu0 0.0
        %407 = vmatpush1.msra.mxu0 0.0
        %408 = vmatprep.subr.mxu0 0.0
        %409 = vmatpush1.msra.mxu0 0.0
        %410 = vmatprep.subr.mxu0 0.0
        %411 = vmatpush1.msra.mxu0 0.0
        %412 = vmatprep.subr.mxu0 0.0
        %413 = vmatpush1.msra.mxu0 0.0
        %414 = vmatprep.mubr.f32.mxu0 0.0
        %415 = vmatmul.mubr.f32.gmra.mrb[0].mxu0 %v348
        %v416 = vpop.f32.mrb[0].mxu0
        %v417 = vadd.f32 0.0, %v416
        %v418 = vpop.f32.mrb[0].mxu0
        %419 = vdwg.mxu0
        %vm420 = vcmask 261120
        %421 = vst.msk [vmem:[%s248] sm:$0xff] %vm420, %v417
        %v422 = vld [vmem:[%s248] sm:$0xff]
        %v423 = vld [vmem:[%s3] sm:$0xf]
        %v424 = vld [vmem:[%s4] sm:$0xff]
        %v425 = vld [vmem:[%s4 + $0x8] sm:$0xff]
        %v426 = vld [vmem:[%s4 + $0x10] sm:$0xff]
        %v427 = vld [vmem:[%s4 + $0x18] sm:$0xff]
        %vm428 = vcmask 64512
        %v430 = vsel %vm428, %v423, 0
        %432 = vmatprep.subr.mxu0 0.0
        %433 = vmatpush1.msra.mxu0 %v422
        %434 = vmatprep.subr.mxu0 0.0
        %435 = vmatpush1.msra.mxu0 0.0
        %436 = vmatprep.subr.mxu0 0.0
        %437 = vmatpush1.msra.mxu0 0.0
        %438 = vmatprep.subr.mxu0 0.0
        %439 = vmatpush1.msra.mxu0 0.0
        %440 = vmatprep.subr.mxu0 0.0
        %441 = vmatpush1.msra.mxu0 0.0
        %442 = vmatprep.subr.mxu0 0.0
        %443 = vmatpush1.msra.mxu0 0.0
        %444 = vmatprep.subr.mxu0 0.0
        %445 = vmatpush1.msra.mxu0 0.0
        %446 = vmatprep.subr.mxu0 0.0
        %447 = vmatpush1.msra.mxu0 0.0
        %448 = vmatprep.subr.mxu0 0.0
        %449 = vmatpush1.msra.mxu0 0.0
        %450 = vmatprep.subr.mxu0 0.0
        %451 = vmatpush1.msra.mxu0 0.0
        %452 = vmatprep.subr.mxu0 0.0
        %453 = vmatpush1.msra.mxu0 0.0
        %454 = vmatprep.subr.mxu0 0.0
        %455 = vmatpush1.msra.mxu0 0.0
        %456 = vmatprep.subr.mxu0 0.0
        %457 = vmatpush1.msra.mxu0 0.0
        %458 = vmatprep.subr.mxu0 0.0
        %459 = vmatpush1.msra.mxu0 0.0
        %460 = vmatprep.subr.mxu0 0.0
        %461 = vmatpush1.msra.mxu0 0.0
        %462 = vmatprep.subr.mxu0 0.0
        %463 = vmatpush1.msra.mxu0 0.0
        %464 = vmatprep.subr.mxu0 0.0
        %465 = vmatpush1.msra.mxu0 0.0
        %466 = vmatprep.subr.mxu0 0.0
        %467 = vmatpush1.msra.mxu0 0.0
        %468 = vmatprep.subr.mxu0 0.0
        %469 = vmatpush1.msra.mxu0 0.0
        %470 = vmatprep.subr.mxu0 0.0
        %471 = vmatpush1.msra.mxu0 0.0
        %472 = vmatprep.subr.mxu0 0.0
        %473 = vmatpush1.msra.mxu0 0.0
        %474 = vmatprep.subr.mxu0 0.0
        %475 = vmatpush1.msra.mxu0 0.0
        %476 = vmatprep.subr.mxu0 0.0
        %477 = vmatpush1.msra.mxu0 0.0
        %478 = vmatprep.subr.mxu0 0.0
        %479 = vmatpush1.msra.mxu0 0.0
        %480 = vmatprep.subr.mxu0 0.0
        %481 = vmatpush1.msra.mxu0 0.0
        %482 = vmatprep.subr.mxu0 0.0
        %483 = vmatpush1.msra.mxu0 0.0
        %484 = vmatprep.subr.mxu0 0.0
        %485 = vmatpush1.msra.mxu0 0.0
        %486 = vmatprep.subr.mxu0 0.0
        %487 = vmatpush1.msra.mxu0 0.0
        %488 = vmatprep.subr.mxu0 0.0
        %489 = vmatpush1.msra.mxu0 0.0
        %490 = vmatprep.subr.mxu0 0.0
        %491 = vmatpush1.msra.mxu0 0.0
        %492 = vmatprep.subr.mxu0 0.0
        %493 = vmatpush1.msra.mxu0 0.0
        %494 = vmatprep.subr.mxu0 0.0
        %495 = vmatpush1.msra.mxu0 0.0
        %496 = vmatprep.mubr.f32.mxu0 0.0
        %497 = vmatmul.mubr.f32.gmra.mrb[0].mxu0 %v430
        %v498 = vpop.f32.mrb[0].mxu0
        %v499 = vadd.f32 0.0, %v498
        %v500 = vpop.f32.mrb[0].mxu0
        %501 = vdwg.mxu0
        %v503 = vsel %vm420, %v499, 0
        %505 = vmatprep.subr.mxu0 0.0
        %506 = vmatpush1.msra.mxu0 %v424
        %507 = vmatprep.subr.mxu0 0.0
        %508 = vmatpush1.msra.mxu0 %v425
        %509 = vmatprep.subr.mxu0 0.0
        %510 = vmatpush1.msra.mxu0 %v426
        %511 = vmatprep.subr.mxu0 0.0
        %512 = vmatpush1.msra.mxu0 %v427
        %513 = vmatprep.subr.mxu0 0.0
        %514 = vmatpush1.msra.mxu0 0.0
        %515 = vmatprep.subr.mxu0 0.0
        %516 = vmatpush1.msra.mxu0 0.0
        %517 = vmatprep.subr.mxu0 0.0
        %518 = vmatpush1.msra.mxu0 0.0
        %519 = vmatprep.subr.mxu0 0.0
        %520 = vmatpush1.msra.mxu0 0.0
        %521 = vmatprep.subr.mxu0 0.0
        %522 = vmatpush1.msra.mxu0 0.0
        %523 = vmatprep.subr.mxu0 0.0
        %524 = vmatpush1.msra.mxu0 0.0
        %525 = vmatprep.subr.mxu0 0.0
        %526 = vmatpush1.msra.mxu0 0.0
        %527 = vmatprep.subr.mxu0 0.0
        %528 = vmatpush1.msra.mxu0 0.0
        %529 = vmatprep.subr.mxu0 0.0
        %530 = vmatpush1.msra.mxu0 0.0
        %531 = vmatprep.subr.mxu0 0.0
        %532 = vmatpush1.msra.mxu0 0.0
        %533 = vmatprep.subr.mxu0 0.0
        %534 = vmatpush1.msra.mxu0 0.0
        %535 = vmatprep.subr.mxu0 0.0
        %536 = vmatpush1.msra.mxu0 0.0
        %537 = vmatprep.subr.mxu0 0.0
        %538 = vmatpush1.msra.mxu0 0.0
        %539 = vmatprep.subr.mxu0 0.0
        %540 = vmatpush1.msra.mxu0 0.0
        %541 = vmatprep.subr.mxu0 0.0
        %542 = vmatpush1.msra.mxu0 0.0
        %543 = vmatprep.subr.mxu0 0.0
        %544 = vmatpush1.msra.mxu0 0.0
        %545 = vmatprep.subr.mxu0 0.0
        %546 = vmatpush1.msra.mxu0 0.0
        %547 = vmatprep.subr.mxu0 0.0
        %548 = vmatpush1.msra.mxu0 0.0
        %549 = vmatprep.subr.mxu0 0.0
        %550 = vmatpush1.msra.mxu0 0.0
        %551 = vmatprep.subr.mxu0 0.0
        %552 = vmatpush1.msra.mxu0 0.0
        %553 = vmatprep.subr.mxu0 0.0
        %554 = vmatpush1.msra.mxu0 0.0
        %555 = vmatprep.subr.mxu0 0.0
        %556 = vmatpush1.msra.mxu0 0.0
        %557 = vmatprep.subr.mxu0 0.0
        %558 = vmatpush1.msra.mxu0 0.0
        %559 = vmatprep.subr.mxu0 0.0
        %560 = vmatpush1.msra.mxu0 0.0
        %561 = vmatprep.subr.mxu0 0.0
        %562 = vmatpush1.msra.mxu0 0.0
        %563 = vmatprep.subr.mxu0 0.0
        %564 = vmatpush1.msra.mxu0 0.0
        %565 = vmatprep.subr.mxu0 0.0
        %566 = vmatpush1.msra.mxu0 0.0
        %567 = vmatprep.subr.mxu0 0.0
        %568 = vmatpush1.msra.mxu0 0.0
        %569 = vmatprep.mubr.f32.mxu0 0.0
        %570 = vmatmul.mubr.f32.gmra.mrb[0].mxu0 %v503
        %v571 = vpop.f32.mrb[0].mxu0
        %v572 = vadd.f32 0.0, %v571
        %v573 = vpop.f32.mrb[0].mxu0
        %574 = vdwg.mxu0
        %vm575 = vcmask 125952
        %576 = vst.msk [vmem:[%s255] sm:$0xf] %vm575, %v572
        %s577 = sand.u32 %s142, 1
        %s578 = scalar_lea.sflag [#allocation3], %s577
        %s579 = sand.u32 %s142, 1
        %s580 = smul.addr %s579, 8
        %s581 = scalar_lea.vmem [#allocation2], %s580
        %s582 = sand.u32 %s168, 1
        %s583 = scalar_lea.sflag [#allocation5], %s582
        %s584 = sand.u32 %s168, 1
        %s585 = smul.addr %s584, 4
        %s586 = scalar_lea.vmem [#allocation4], %s585
        // Predicated region
        $region41: #{tpu_custom_call.1} parent=39 // pred_check
          %p587 = pneg %p152
        $region42: #{tpu_custom_call.1} parent=39 // pred_check_branch
          %589 = sbr.rel (%p587) target = $region44
        $region43: #{tpu_custom_call.1} parent=39 // pred_region
          %s591 = ssub.s32 128, 128
          %592 = vsyncadd %s578, %s591
          %s593 = smul.addr %s24, 128
          %s594 = scalar_lea.hbm %s5, %s593
          %s596 = sshll.u32 %s581, 4
          %s597 = int_to_ptr.vmem [resolvable:$true] %s596
          %599 = dma.vmem_to_hbm [thread:$0]  %s597, 128, %s594, %s578
        $region44: #{tpu_custom_call.1} parent=39 // pred_fallthru
          _
        // Predicated region
        $region45: #{tpu_custom_call.1} parent=39 // pred_check
          %p600 = pneg %p178
        $region46: #{tpu_custom_call.1} parent=39 // pred_check_branch
          %602 = sbr.rel (%p600) target = $region48
        $region47: #{tpu_custom_call.1} parent=39 // pred_region
          %s604 = ssub.s32 64, 64
          %605 = vsyncadd %s583, %s604
          %s606 = smul.addr %s24, 64
          %s607 = scalar_lea.hbm %s6, %s606
          %s609 = sshll.u32 %s586, 4
          %s610 = int_to_ptr.vmem [resolvable:$true] %s609
          %612 = dma.vmem_to_hbm [thread:$0]  %s610, 64, %s607, %s583
        $region48: #{tpu_custom_call.1} parent=39 // pred_fallthru
          _
      $region40: #{tpu_custom_call.1} parent=5 // pred_fallthru
        _
      %p613 = scmp.le.s32.totalorder 2, %s19
      // Predicated region
      $region49: #{tpu_custom_call.1} parent=5 // pred_check
        %p614 = pneg %p613
      $region50: #{tpu_custom_call.1} parent=5 // pred_check_branch
        %616 = sbr.rel (%p614) target = $region52
      $region51: #{tpu_custom_call.1} parent=5 // pred_region
        %s617 = ssub.s32 %s19, 2
        // Predicated region
        $region53: #{tpu_custom_call.1} parent=51 // pred_check
          %p618 = pneg %p158
        $region54: #{tpu_custom_call.1} parent=51 // pred_check_branch
          %620 = sbr.rel (%p618) target = $region56
        $region55: #{tpu_custom_call.1} parent=51 // pred_region
          %s621 = sand.u32 %s143, 1
          %s622 = scalar_lea.sflag [#allocation3], %s621
          %s623 = sand.u32 %s143, 1
          %s624 = smul.addr %s623, 8
          %s625 = scalar_lea.vmem [#allocation2], %s624
          %626 = dma.done %s622, 128
        $region56: #{tpu_custom_call.1} parent=51 // pred_fallthru
          _
        // Predicated region
        $region57: #{tpu_custom_call.1} parent=51 // pred_check
          %p627 = pneg %p184
        $region58: #{tpu_custom_call.1} parent=51 // pred_check_branch
          %629 = sbr.rel (%p627) target = $region60
        $region59: #{tpu_custom_call.1} parent=51 // pred_region
          %s630 = sand.u32 %s169, 1
          %s631 = scalar_lea.sflag [#allocation5], %s630
          %s632 = sand.u32 %s169, 1
          %s633 = smul.addr %s632, 4
          %s634 = scalar_lea.vmem [#allocation4], %s633
          %635 = dma.done %s631, 64
        $region60: #{tpu_custom_call.1} parent=51 // pred_fallthru
          _
      $region52: #{tpu_custom_call.1} parent=5 // pred_fallthru
        _
    $region6: #{tpu_custom_call.1} parent=1 // loop_footer
      %s23 = sadd.s32 1, %s19
    $region7: #{tpu_custom_call.1} parent=1 // loop_footer_branch
      %18 = sbr.rel target = $region3
    $region8: #{tpu_custom_call.1} parent=1 // loop_exit
      _
    %636 = vsyncpa [#allocation3], 1
    %s637 = scalar_lea.sflag [#allocation3], 1
    %638 = vsyncpa %s637, 1
    %639 = vsyncpa [#allocation5], 1
    %s640 = scalar_lea.sflag [#allocation5], 1
    %641 = vsyncpa %s640, 1

</llo_original>
